<compile_context>
chip_gen: v7x
topology: tpu7x:2x2x1
jax: 0.10.0
libtpu: 0.0.40
codegen_flags: <defaults>
</compile_context>

<pallas_src>
import functools

import jax
import jax.numpy as jnp
from jax import lax
from jax.experimental import pallas as pl
from jax.experimental.pallas import tpu as pltpu


# ----------------------------------------------------------------------------
# Pallas kernel: whole recurrent decode (both LSTMs + output linear) in one
# kernel invocation.
# ----------------------------------------------------------------------------
def decoder_kernel(g1b_ref,            # (1, 4D)  f32  x@W_ih1^T + b_ih1 + b_hh1 (const/t)
                   whh1_ref,           # (D, 4D)  bf16
                   wih2_ref,           # (D, 4H)  bf16
                   whh2_ref,           # (H, 4H)  bf16
                   b2_ref,             # (1, 4H)  f32
                   wout_ref,           # (1, H)   f32
                   bout_ref,           # (1, 1)   f32
                   out_ref,            # (seq_len, 1) f32
                   h2_all,             # VMEM scratch (seq_len, H) f32
                   *, input_dim, hidden_dim, seq_len, unroll):
    D, H = input_dim, hidden_dim
    f32 = jnp.float32
    bf16 = jnp.bfloat16

    # Hoist all weight loads out of the recurrence.
    g1b = g1b_ref[...]
    whh1 = whh1_ref[...]
    wih2 = wih2_ref[...]
    whh2 = whh2_ref[...]
    b2 = b2_ref[...]

    def gate_math(gates, c, hsz):
        # Gate columns were pre-permuted to [i, f, o, g] in the wrapper:
        # one sigmoid over lanes [0, 3h) and one tanh over [3h, 4h)
        # (+ tanh(c_new)) instead of sigmoid+tanh over all 4h lanes.
        sg = jax.nn.sigmoid(gates[:, :3 * hsz])
        g = jnp.tanh(gates[:, 3 * hsz:4 * hsz])
        i = sg[:, 0 * hsz:1 * hsz]
        f = sg[:, 1 * hsz:2 * hsz]
        o = sg[:, 2 * hsz:3 * hsz]
        c_new = f * c + i * g
        h_new = o * jnp.tanh(c_new)
        return h_new, c_new

    def step(t, carry):
        h1, c1, h2, c2 = carry
        # Both recurrent matmuls depend only on previous-step state: issue them
        # back-to-back at the top of the step.  Only the h1_new @ W_ih2^T
        # matmul below sits after LSTM1's nonlinearities on the serial chain.
        gates1 = jnp.dot(h1.astype(bf16), whh1,
                         preferred_element_type=f32) + g1b
        g2_rec = jnp.dot(h2.astype(bf16), whh2,
                         preferred_element_type=f32) + b2
        h1, c1 = gate_math(gates1, c1, D)
        gates2 = jnp.dot(h1.astype(bf16), wih2,
                         preferred_element_type=f32) + g2_rec
        h2, c2 = gate_math(gates2, c2, H)
        # Full-lane (1, H) store of this step's hidden state.
        h2_all[pl.ds(t, 1), :] = h2
        return (h1, c1, h2, c2)

    init = (jnp.zeros((1, D), f32), jnp.zeros((1, D), f32),
            jnp.zeros((1, H), f32), jnp.zeros((1, H), f32))
    # seq_len is static; unroll is chosen by the wrapper (full for small T).
    lax.fori_loop(0, seq_len, step, init, unroll=unroll)

    # Output projection once, outside the recurrence.  An N=1 MXU matmul would
    # waste a push/pop for a handful of scalars -> do it on the VPU (+ XLU lane
    # reduction) in f32 instead.
    out_ref[...] = (jnp.sum(h2_all[...] * wout_ref[...], axis=-1,
                            keepdims=True)
                    + bout_ref[...])


# ----------------------------------------------------------------------------
# Wrapper: torch-semantics glue + algebraic hoisting + pallas_call
# ----------------------------------------------------------------------------
def _permute_gates(w, h):
    """Reorder PyTorch LSTM gate blocks [i, f, g, o] -> [i, f, o, g] (axis 0)."""
    return jnp.concatenate([w[:2 * h], w[3 * h:4 * h], w[2 * h:3 * h]], axis=0)


def decoder_forward(x, lstm1, lstm2, w_out, b_out,
                    seq_len, input_dim, n_features):
    assert n_features == 1, "module's final reshape requires n_features == 1"
    (wih1, whh1, bih1, bhh1) = lstm1
    (wih2, whh2, bih2, bhh2) = lstm2

    # Derive hidden_dim from the weights and fail loudly on inconsistency
    # (the module fixes hidden_dim = 2 * input_dim).
    hidden_dim = whh2.shape[1]
    if hidden_dim != 2 * input_dim:
        raise ValueError(f"hidden_dim={hidden_dim} but module requires "
                         f"2*input_dim={2 * input_dim}")
    assert wih1.shape == (4 * input_dim, input_dim)
    assert whh1.shape == (4 * input_dim, input_dim)
    assert wih2.shape == (4 * hidden_dim, input_dim)
    assert whh2.shape == (4 * hidden_dim, hidden_dim)
    assert w_out.shape == (n_features, hidden_dim)

    hp = lax.Precision.HIGHEST
    f32, bf16 = jnp.float32, jnp.bfloat16

    # Permute gate rows from [i, f, g, o] to [i, f, o, g] (see gate_math).
    wih1_p = _permute_gates(wih1, input_dim)
    whh1_p = _permute_gates(whh1, input_dim)
    b1_p = _permute_gates(bih1 + bhh1, input_dim)
    wih2_p = _permute_gates(wih2, hidden_dim)
    whh2_p = _permute_gates(whh2, hidden_dim)
    b2_p = _permute_gates(bih2 + bhh2, hidden_dim)

    # torch: x.repeat(seq_len, n_features).reshape((n_features, seq_len, D))
    # => every timestep's rnn1 input is the latent row x.  Hoist the
    # loop-invariant input projection (f32, HIGHEST precision) and fold it plus
    # both LSTM1 biases into one per-gate constant.
    x_row = x.reshape(1, input_dim).astype(f32)
    g1_bias = jnp.dot(x_row, wih1_p.T, precision=hp) + b1_p[None, :]   # (1, 4D)

    # MXU matmul operands in bf16 (explicit and deliberate); all accumulation
    # and gate/state/VPU/EUP math stays f32.
    whh1_t = whh1_p.T.astype(bf16)                         # (D, 4D)
    wih2_t = wih2_p.T.astype(bf16)                         # (D, 4H)
    whh2_t = whh2_p.T.astype(bf16)                         # (H, 4H)
    b2 = b2_p.reshape(1, 4 * hidden_dim).astype(f32)       # (1, 4H)
    wout_row = w_out.reshape(1, hidden_dim).astype(f32)    # (1, H) VPU proj, f32
    bout = b_out.reshape(1, 1).astype(f32)                 # (1, 1)

    # Gate the recurrence unroll on seq_len: full unroll only for short
    # sequences (vreg-pressure / spill control for long ones).
    unroll = True if seq_len <= 32 else 8

    kernel = functools.partial(decoder_kernel,
                               input_dim=input_dim,
                               hidden_dim=hidden_dim,
                               seq_len=seq_len,
                               unroll=unroll)

    operands = (g1_bias, whh1_t, wih2_t, whh2_t, b2, wout_row, bout)
    vmem_spec = pl.BlockSpec(memory_space=pltpu.MemorySpace.VMEM)

    # TODO(synk): hold the recurrent weights resident in the MXU across steps
    # (pltpu.matmul_push_rhs / matmul_acc_lhs / matmul_pop, MRB accumulation on
    # v7x) — kept on portable jnp.dot lowering here.
    # TODO(synk): a real multi-sequence workload should batch sequences into
    # the sublane dim ((B, K) @ (K, 4H) matmuls) and add a "parallel" batch
    # grid axis so v7x's two TensorCores both get work; with one latent vector
    # there is nothing to shard.  VMEM footprint (<0.5 MiB) is far under v7x's
    # 64 MiB; re-budget only if seq_len/batch grows.
    out = pl.pallas_call(
        kernel,
        out_shape=jax.ShapeDtypeStruct((seq_len, n_features), f32),
        in_specs=[vmem_spec for _ in operands],
        out_specs=vmem_spec,
        scratch_shapes=[
            pltpu.VMEM((seq_len, hidden_dim), f32),    # per-step h2 staging
        ],
    )(*operands)
    return out


# ----------------------------------------------------------------------------
# Pure-JAX reference (faithful f32 HIGHEST math) for a sanity check
# ----------------------------------------------------------------------------
def decoder_ref(x, lstm1, lstm2, w_out, b_out, seq_len, input_dim, n_features):
    hidden_dim = 2 * input_dim
    hp = lax.Precision.HIGHEST
    x_seq = jnp.tile(x, (seq_len, n_features)).reshape(
        (n_features, seq_len, input_dim))[0]

    (wih1, whh1, bih1, bhh1) = lstm1
    (wih2, whh2, bih2, bhh2) = lstm2
    b1 = (bih1 + bhh1)[None, :]
    b2 = (bih2 + bhh2)[None, :]

    def cell(x_t, h, c, wih, whh, b, hsz):
        g = (jnp.dot(x_t, wih.T, precision=hp)
             + jnp.dot(h, whh.T, precision=hp) + b)
        i = jax.nn.sigmoid(g[:, :hsz])
        f = jax.nn.sigmoid(g[:, hsz:2 * hsz])
        gg = jnp.tanh(g[:, 2 * hsz:3 * hsz])
        o = jax.nn.sigmoid(g[:, 3 * hsz:])
        c = f * c + i * gg
        h = o * jnp.tanh(c)
        return h, c

    h1 = jnp.zeros((1, input_dim)); c1 = jnp.zeros((1, input_dim))
    h2 = jnp.zeros((1, hidden_dim)); c2 = jnp.zeros((1, hidden_dim))
    outs = []
    for t in range(seq_len):
        x_t = x_seq[t:t + 1]
        h1, c1 = cell(x_t, h1, c1, wih1, whh1, b1, input_dim)
        h2, c2 = cell(h1, h2, c2, wih2, whh2, b2, hidden_dim)
        outs.append(jnp.dot(h2, w_out.T, precision=hp) + b_out[None, :])
    return jnp.concatenate(outs, axis=0)


# ----------------------------------------------------------------------------
# Deterministic parameter init (PyTorch-style U(-1/sqrt(H), 1/sqrt(H)))
# ----------------------------------------------------------------------------
def init_lstm_params(key, in_dim, hidden):
    k = 1.0 / float(hidden) ** 0.5
    k0, k1, k2, k3 = jax.random.split(key, 4)
    wih = jax.random.uniform(k0, (4 * hidden, in_dim), minval=-k, maxval=k,
                             dtype=jnp.float32)
    whh = jax.random.uniform(k1, (4 * hidden, hidden), minval=-k, maxval=k,
                             dtype=jnp.float32)
    bih = jax.random.uniform(k2, (4 * hidden,), minval=-k, maxval=k,
                             dtype=jnp.float32)
    bhh = jax.random.uniform(k3, (4 * hidden,), minval=-k, maxval=k,
                             dtype=jnp.float32)
    return wih, whh, bih, bhh


if __name__ == "__main__":
    seq_len, input_dim, n_features = 8, 32, 1
    hidden_dim = 2 * input_dim

    key = jax.random.PRNGKey(0)
    kx, k1, k2, k3, k4 = jax.random.split(key, 5)

    # decoder input: the latent vector, shape (1, input_dim)
    x = jax.random.normal(kx, (1, input_dim), dtype=jnp.float32)

    lstm1 = init_lstm_params(k1, input_dim, input_dim)      # rnn1
    lstm2 = init_lstm_params(k2, input_dim, hidden_dim)     # rnn2
    ko = 1.0 / float(hidden_dim) ** 0.5
    w_out = jax.random.uniform(k3, (n_features, hidden_dim), minval=-ko,
                               maxval=ko, dtype=jnp.float32)
    b_out = jax.random.uniform(k4, (n_features,), minval=-ko, maxval=ko,
                               dtype=jnp.float32)

    out = decoder_forward(x, lstm1, lstm2, w_out, b_out,
                          seq_len, input_dim, n_features)
    out = jax.block_until_ready(out)

    ref = decoder_ref(x, lstm1, lstm2, w_out, b_out,
                      seq_len, input_dim, n_features)
    assert out.shape == (seq_len, n_features)
    # bf16 MXU operands (deliberate, per perf guidance) accumulate a few e-3 of
    # error across the 8-step recurrence vs the f32 HIGHEST reference.
    assert jnp.allclose(out, ref, atol=2e-2, rtol=2e-2), "mismatch vs reference"

    print("KERNEL_OK")
</pallas_src>

<mosaic_0001>
module attributes {stable_mosaic.version = 11 : i64} {
  func.func @decoder_kernel(%arg0: memref<1x128xf32, #tpu.memory_space<vmem>>, %arg1: memref<32x128xbf16, #tpu.memory_space<vmem>>, %arg2: memref<32x256xbf16, #tpu.memory_space<vmem>>, %arg3: memref<64x256xbf16, #tpu.memory_space<vmem>>, %arg4: memref<1x256xf32, #tpu.memory_space<vmem>>, %arg5: memref<1x64xf32, #tpu.memory_space<vmem>>, %arg6: memref<1x1xf32, #tpu.memory_space<vmem>>, %arg7: memref<8x1xf32, #tpu.memory_space<vmem>>, %arg8: memref<8x64xf32, #tpu.memory_space<vmem>>) attributes {dimension_semantics = [], scalar_prefetch = 0 : i64, scratch_operands = 1 : i64, tpu.core_type = #tpu.core_type<tc>} {
    %c0 = arith.constant 0 : index
    %c0_0 = arith.constant 0 : index
    %0 = vector.load %arg0[%c0, %c0_0] : memref<1x128xf32, #tpu.memory_space<vmem>>, vector<1x128xf32>
    %c0_1 = arith.constant 0 : index
    %c0_2 = arith.constant 0 : index
    %1 = vector.load %arg1[%c0_1, %c0_2] : memref<32x128xbf16, #tpu.memory_space<vmem>>, vector<32x128xbf16>
    %c0_3 = arith.constant 0 : index
    %c0_4 = arith.constant 0 : index
    %2 = vector.load %arg2[%c0_3, %c0_4] : memref<32x256xbf16, #tpu.memory_space<vmem>>, vector<32x256xbf16>
    %c0_5 = arith.constant 0 : index
    %c0_6 = arith.constant 0 : index
    %3 = vector.load %arg3[%c0_5, %c0_6] : memref<64x256xbf16, #tpu.memory_space<vmem>>, vector<64x256xbf16>
    %c0_7 = arith.constant 0 : index
    %c0_8 = arith.constant 0 : index
    %4 = vector.load %arg4[%c0_7, %c0_8] : memref<1x256xf32, #tpu.memory_space<vmem>>, vector<1x256xf32>
    %cst = arith.constant 0.000000e+00 : f32
    %5 = vector.broadcast %cst : f32 to vector<1x32xf32>
    %cst_9 = arith.constant 0.000000e+00 : f32
    %6 = vector.broadcast %cst_9 : f32 to vector<1x32xf32>
    %cst_10 = arith.constant 0.000000e+00 : f32
    %7 = vector.broadcast %cst_10 : f32 to vector<1x64xf32>
    %cst_11 = arith.constant 0.000000e+00 : f32
    %8 = vector.broadcast %cst_11 : f32 to vector<1x64xf32>
    %c0_i32 = arith.constant 0 : i32
    %9 = arith.truncf %5 : vector<1x32xf32> to vector<1x32xbf16>
    %cst_12 = arith.constant dense<0.000000e+00> : vector<1x128xf32>
    %10 = tpu.matmul %9, %1, %cst_12 {dimension_numbers = #tpu.dot_dimension_numbers<[1], [0], [0], [1], [0, 0, 1, 1], [], []>} : vector<1x32xbf16>, vector<32x128xbf16>, vector<1x128xf32> -> vector<1x128xf32>
    %11 = arith.addf %10, %0 : vector<1x128xf32>
    %12 = arith.truncf %7 : vector<1x64xf32> to vector<1x64xbf16>
    %cst_13 = arith.constant dense<0.000000e+00> : vector<1x256xf32>
    %13 = tpu.matmul %12, %3, %cst_13 {dimension_numbers = #tpu.dot_dimension_numbers<[1], [0], [0], [1], [0, 0, 1, 1], [], []>} : vector<1x64xbf16>, vector<64x256xbf16>, vector<1x256xf32> -> vector<1x256xf32>
    %14 = arith.addf %13, %4 : vector<1x256xf32>
    %15 = vector.extract_strided_slice %11 {offsets = [0, 0], sizes = [1, 96], strides = [1, 1]} : vector<1x128xf32> to vector<1x96xf32>
    %16 = arith.negf %15 : vector<1x96xf32>
    %17 = math.exp %16 : vector<1x96xf32>
    %cst_14 = arith.constant 1.000000e+00 : f32
    %18 = vector.broadcast %cst_14 : f32 to vector<1x96xf32>
    %19 = arith.addf %18, %17 : vector<1x96xf32>
    %20 = arith.divf %18, %19 : vector<1x96xf32>
    %21 = vector.extract_strided_slice %11 {offsets = [0, 96], sizes = [1, 32], strides = [1, 1]} : vector<1x128xf32> to vector<1x32xf32>
    %22 = math.tanh %21 : vector<1x32xf32>
    %23 = vector.extract_strided_slice %20 {offsets = [0, 0], sizes = [1, 32], strides = [1, 1]} : vector<1x96xf32> to vector<1x32xf32>
    %24 = vector.extract_strided_slice %20 {offsets = [0, 32], sizes = [1, 32], strides = [1, 1]} : vector<1x96xf32> to vector<1x32xf32>
    %25 = vector.extract_strided_slice %20 {offsets = [0, 64], sizes = [1, 32], strides = [1, 1]} : vector<1x96xf32> to vector<1x32xf32>
    %26 = arith.mulf %24, %6 : vector<1x32xf32>
    %27 = arith.mulf %23, %22 : vector<1x32xf32>
    %28 = arith.addf %26, %27 : vector<1x32xf32>
    %29 = math.tanh %28 : vector<1x32xf32>
    %30 = arith.mulf %25, %29 : vector<1x32xf32>
    %31 = arith.truncf %30 : vector<1x32xf32> to vector<1x32xbf16>
    %cst_15 = arith.constant dense<0.000000e+00> : vector<1x256xf32>
    %32 = tpu.matmul %31, %2, %cst_15 {dimension_numbers = #tpu.dot_dimension_numbers<[1], [0], [0], [1], [0, 0, 1, 1], [], []>} : vector<1x32xbf16>, vector<32x256xbf16>, vector<1x256xf32> -> vector<1x256xf32>
    %33 = arith.addf %32, %14 : vector<1x256xf32>
    %34 = vector.extract_strided_slice %33 {offsets = [0, 0], sizes = [1, 192], strides = [1, 1]} : vector<1x256xf32> to vector<1x192xf32>
    %35 = arith.negf %34 : vector<1x192xf32>
    %36 = math.exp %35 : vector<1x192xf32>
    %cst_16 = arith.constant 1.000000e+00 : f32
    %37 = vector.broadcast %cst_16 : f32 to vector<1x192xf32>
    %38 = arith.addf %37, %36 : vector<1x192xf32>
    %39 = arith.divf %37, %38 : vector<1x192xf32>
    %40 = vector.extract_strided_slice %33 {offsets = [0, 192], sizes = [1, 64], strides = [1, 1]} : vector<1x256xf32> to vector<1x64xf32>
    %41 = math.tanh %40 : vector<1x64xf32>
    %42 = vector.extract_strided_slice %39 {offsets = [0, 0], sizes = [1, 64], strides = [1, 1]} : vector<1x192xf32> to vector<1x64xf32>
    %43 = vector.extract_strided_slice %39 {offsets = [0, 64], sizes = [1, 64], strides = [1, 1]} : vector<1x192xf32> to vector<1x64xf32>
    %44 = vector.extract_strided_slice %39 {offsets = [0, 128], sizes = [1, 64], strides = [1, 1]} : vector<1x192xf32> to vector<1x64xf32>
    %45 = arith.mulf %43, %8 : vector<1x64xf32>
    %46 = arith.mulf %42, %41 : vector<1x64xf32>
    %47 = arith.addf %45, %46 : vector<1x64xf32>
    %48 = math.tanh %47 : vector<1x64xf32>
    %49 = arith.mulf %44, %48 : vector<1x64xf32>
    %50 = arith.index_cast %c0_i32 : i32 to index
    %c0_17 = arith.constant 0 : index
    %51 = vector.load %arg8[%50, %c0_17] : memref<8x64xf32, #tpu.memory_space<vmem>>, vector<1x64xf32>
    tpu.vector_store %arg8[%50, %c0_17], %49 {strides = array<i32>} : memref<8x64xf32, #tpu.memory_space<vmem>>, vector<1x64xf32>,
    %c1_i32 = arith.constant 1 : i32
    %52 = arith.truncf %30 : vector<1x32xf32> to vector<1x32xbf16>
    %cst_18 = arith.constant dense<0.000000e+00> : vector<1x128xf32>
    %53 = tpu.matmul %52, %1, %cst_18 {dimension_numbers = #tpu.dot_dimension_numbers<[1], [0], [0], [1], [0, 0, 1, 1], [], []>} : vector<1x32xbf16>, vector<32x128xbf16>, vector<1x128xf32> -> vector<1x128xf32>
    %54 = arith.addf %53, %0 : vector<1x128xf32>
    %55 = arith.truncf %49 : vector<1x64xf32> to vector<1x64xbf16>
    %cst_19 = arith.constant dense<0.000000e+00> : vector<1x256xf32>
    %56 = tpu.matmul %55, %3, %cst_19 {dimension_numbers = #tpu.dot_dimension_numbers<[1], [0], [0], [1], [0, 0, 1, 1], [], []>} : vector<1x64xbf16>, vector<64x256xbf16>, vector<1x256xf32> -> vector<1x256xf32>
    %57 = arith.addf %56, %4 : vector<1x256xf32>
    %58 = vector.extract_strided_slice %54 {offsets = [0, 0], sizes = [1, 96], strides = [1, 1]} : vector<1x128xf32> to vector<1x96xf32>
    %59 = arith.negf %58 : vector<1x96xf32>
    %60 = math.exp %59 : vector<1x96xf32>
    %cst_20 = arith.constant 1.000000e+00 : f32
    %61 = vector.broadcast %cst_20 : f32 to vector<1x96xf32>
    %62 = arith.addf %61, %60 : vector<1x96xf32>
    %63 = arith.divf %61, %62 : vector<1x96xf32>
    %64 = vector.extract_strided_slice %54 {offsets = [0, 96], sizes = [1, 32], strides = [1, 1]} : vector<1x128xf32> to vector<1x32xf32>
    %65 = math.tanh %64 : vector<1x32xf32>
    %66 = vector.extract_strided_slice %63 {offsets = [0, 0], sizes = [1, 32], strides = [1, 1]} : vector<1x96xf32> to vector<1x32xf32>
    %67 = vector.extract_strided_slice %63 {offsets = [0, 32], sizes = [1, 32], strides = [1, 1]} : vector<1x96xf32> to vector<1x32xf32>
    %68 = vector.extract_strided_slice %63 {offsets = [0, 64], sizes = [1, 32], strides = [1, 1]} : vector<1x96xf32> to vector<1x32xf32>
    %69 = arith.mulf %67, %28 : vector<1x32xf32>
    %70 = arith.mulf %66, %65 : vector<1x32xf32>
    %71 = arith.addf %69, %70 : vector<1x32xf32>
    %72 = math.tanh %71 : vector<1x32xf32>
    %73 = arith.mulf %68, %72 : vector<1x32xf32>
    %74 = arith.truncf %73 : vector<1x32xf32> to vector<1x32xbf16>
    %cst_21 = arith.constant dense<0.000000e+00> : vector<1x256xf32>
    %75 = tpu.matmul %74, %2, %cst_21 {dimension_numbers = #tpu.dot_dimension_numbers<[1], [0], [0], [1], [0, 0, 1, 1], [], []>} : vector<1x32xbf16>, vector<32x256xbf16>, vector<1x256xf32> -> vector<1x256xf32>
    %76 = arith.addf %75, %57 : vector<1x256xf32>
    %77 = vector.extract_strided_slice %76 {offsets = [0, 0], sizes = [1, 192], strides = [1, 1]} : vector<1x256xf32> to vector<1x192xf32>
    %78 = arith.negf %77 : vector<1x192xf32>
    %79 = math.exp %78 : vector<1x192xf32>
    %cst_22 = arith.constant 1.000000e+00 : f32
    %80 = vector.broadcast %cst_22 : f32 to vector<1x192xf32>
    %81 = arith.addf %80, %79 : vector<1x192xf32>
    %82 = arith.divf %80, %81 : vector<1x192xf32>
    %83 = vector.extract_strided_slice %76 {offsets = [0, 192], sizes = [1, 64], strides = [1, 1]} : vector<1x256xf32> to vector<1x64xf32>
    %84 = math.tanh %83 : vector<1x64xf32>
    %85 = vector.extract_strided_slice %82 {offsets = [0, 0], sizes = [1, 64], strides = [1, 1]} : vector<1x192xf32> to vector<1x64xf32>
    %86 = vector.extract_strided_slice %82 {offsets = [0, 64], sizes = [1, 64], strides = [1, 1]} : vector<1x192xf32> to vector<1x64xf32>
    %87 = vector.extract_strided_slice %82 {offsets = [0, 128], sizes = [1, 64], strides = [1, 1]} : vector<1x192xf32> to vector<1x64xf32>
    %88 = arith.mulf %86, %47 : vector<1x64xf32>
    %89 = arith.mulf %85, %84 : vector<1x64xf32>
    %90 = arith.addf %88, %89 : vector<1x64xf32>
    %91 = math.tanh %90 : vector<1x64xf32>
    %92 = arith.mulf %87, %91 : vector<1x64xf32>
    %93 = arith.index_cast %c1_i32 : i32 to index
    %c0_23 = arith.constant 0 : index
    %94 = vector.load %arg8[%93, %c0_23] : memref<8x64xf32, #tpu.memory_space<vmem>>, vector<1x64xf32>
    tpu.vector_store %arg8[%93, %c0_23], %92 {strides = array<i32>} : memref<8x64xf32, #tpu.memory_space<vmem>>, vector<1x64xf32>,
    %c2_i32 = arith.constant 2 : i32
    %95 = arith.truncf %73 : vector<1x32xf32> to vector<1x32xbf16>
    %cst_24 = arith.constant dense<0.000000e+00> : vector<1x128xf32>
    %96 = tpu.matmul %95, %1, %cst_24 {dimension_numbers = #tpu.dot_dimension_numbers<[1], [0], [0], [1], [0, 0, 1, 1], [], []>} : vector<1x32xbf16>, vector<32x128xbf16>, vector<1x128xf32> -> vector<1x128xf32>
    %97 = arith.addf %96, %0 : vector<1x128xf32>
    %98 = arith.truncf %92 : vector<1x64xf32> to vector<1x64xbf16>
    %cst_25 = arith.constant dense<0.000000e+00> : vector<1x256xf32>
    %99 = tpu.matmul %98, %3, %cst_25 {dimension_numbers = #tpu.dot_dimension_numbers<[1], [0], [0], [1], [0, 0, 1, 1], [], []>} : vector<1x64xbf16>, vector<64x256xbf16>, vector<1x256xf32> -> vector<1x256xf32>
    %100 = arith.addf %99, %4 : vector<1x256xf32>
    %101 = vector.extract_strided_slice %97 {offsets = [0, 0], sizes = [1, 96], strides = [1, 1]} : vector<1x128xf32> to vector<1x96xf32>
    %102 = arith.negf %101 : vector<1x96xf32>
    %103 = math.exp %102 : vector<1x96xf32>
    %cst_26 = arith.constant 1.000000e+00 : f32
    %104 = vector.broadcast %cst_26 : f32 to vector<1x96xf32>
    %105 = arith.addf %104, %103 : vector<1x96xf32>
    %106 = arith.divf %104, %105 : vector<1x96xf32>
    %107 = vector.extract_strided_slice %97 {offsets = [0, 96], sizes = [1, 32], strides = [1, 1]} : vector<1x128xf32> to vector<1x32xf32>
    %108 = math.tanh %107 : vector<1x32xf32>
    %109 = vector.extract_strided_slice %106 {offsets = [0, 0], sizes = [1, 32], strides = [1, 1]} : vector<1x96xf32> to vector<1x32xf32>
    %110 = vector.extract_strided_slice %106 {offsets = [0, 32], sizes = [1, 32], strides = [1, 1]} : vector<1x96xf32> to vector<1x32xf32>
    %111 = vector.extract_strided_slice %106 {offsets = [0, 64], sizes = [1, 32], strides = [1, 1]} : vector<1x96xf32> to vector<1x32xf32>
    %112 = arith.mulf %110, %71 : vector<1x32xf32>
    %113 = arith.mulf %109, %108 : vector<1x32xf32>
    %114 = arith.addf %112, %113 : vector<1x32xf32>
    %115 = math.tanh %114 : vector<1x32xf32>
    %116 = arith.mulf %111, %115 : vector<1x32xf32>
    %117 = arith.truncf %116 : vector<1x32xf32> to vector<1x32xbf16>
    %cst_27 = arith.constant dense<0.000000e+00> : vector<1x256xf32>
    %118 = tpu.matmul %117, %2, %cst_27 {dimension_numbers = #tpu.dot_dimension_numbers<[1], [0], [0], [1], [0, 0, 1, 1], [], []>} : vector<1x32xbf16>, vector<32x256xbf16>, vector<1x256xf32> -> vector<1x256xf32>
    %119 = arith.addf %118, %100 : vector<1x256xf32>
    %120 = vector.extract_strided_slice %119 {offsets = [0, 0], sizes = [1, 192], strides = [1, 1]} : vector<1x256xf32> to vector<1x192xf32>
    %121 = arith.negf %120 : vector<1x192xf32>
    %122 = math.exp %121 : vector<1x192xf32>
    %cst_28 = arith.constant 1.000000e+00 : f32
    %123 = vector.broadcast %cst_28 : f32 to vector<1x192xf32>
    %124 = arith.addf %123, %122 : vector<1x192xf32>
    %125 = arith.divf %123, %124 : vector<1x192xf32>
    %126 = vector.extract_strided_slice %119 {offsets = [0, 192], sizes = [1, 64], strides = [1, 1]} : vector<1x256xf32> to vector<1x64xf32>
    %127 = math.tanh %126 : vector<1x64xf32>
    %128 = vector.extract_strided_slice %125 {offsets = [0, 0], sizes = [1, 64], strides = [1, 1]} : vector<1x192xf32> to vector<1x64xf32>
    %129 = vector.extract_strided_slice %125 {offsets = [0, 64], sizes = [1, 64], strides = [1, 1]} : vector<1x192xf32> to vector<1x64xf32>
    %130 = vector.extract_strided_slice %125 {offsets = [0, 128], sizes = [1, 64], strides = [1, 1]} : vector<1x192xf32> to vector<1x64xf32>
    %131 = arith.mulf %129, %90 : vector<1x64xf32>
    %132 = arith.mulf %128, %127 : vector<1x64xf32>
    %133 = arith.addf %131, %132 : vector<1x64xf32>
    %134 = math.tanh %133 : vector<1x64xf32>
    %135 = arith.mulf %130, %134 : vector<1x64xf32>
    %136 = arith.index_cast %c2_i32 : i32 to index
    %c0_29 = arith.constant 0 : index
    %137 = vector.load %arg8[%136, %c0_29] : memref<8x64xf32, #tpu.memory_space<vmem>>, vector<1x64xf32>
    tpu.vector_store %arg8[%136, %c0_29], %135 {strides = array<i32>} : memref<8x64xf32, #tpu.memory_space<vmem>>, vector<1x64xf32>,
    %c3_i32 = arith.constant 3 : i32
    %138 = arith.truncf %116 : vector<1x32xf32> to vector<1x32xbf16>
    %cst_30 = arith.constant dense<0.000000e+00> : vector<1x128xf32>
    %139 = tpu.matmul %138, %1, %cst_30 {dimension_numbers = #tpu.dot_dimension_numbers<[1], [0], [0], [1], [0, 0, 1, 1], [], []>} : vector<1x32xbf16>, vector<32x128xbf16>, vector<1x128xf32> -> vector<1x128xf32>
    %140 = arith.addf %139, %0 : vector<1x128xf32>
    %141 = arith.truncf %135 : vector<1x64xf32> to vector<1x64xbf16>
    %cst_31 = arith.constant dense<0.000000e+00> : vector<1x256xf32>
    %142 = tpu.matmul %141, %3, %cst_31 {dimension_numbers = #tpu.dot_dimension_numbers<[1], [0], [0], [1], [0, 0, 1, 1], [], []>} : vector<1x64xbf16>, vector<64x256xbf16>, vector<1x256xf32> -> vector<1x256xf32>
    %143 = arith.addf %142, %4 : vector<1x256xf32>
    %144 = vector.extract_strided_slice %140 {offsets = [0, 0], sizes = [1, 96], strides = [1, 1]} : vector<1x128xf32> to vector<1x96xf32>
    %145 = arith.negf %144 : vector<1x96xf32>
    %146 = math.exp %145 : vector<1x96xf32>
    %cst_32 = arith.constant 1.000000e+00 : f32
    %147 = vector.broadcast %cst_32 : f32 to vector<1x96xf32>
    %148 = arith.addf %147, %146 : vector<1x96xf32>
    %149 = arith.divf %147, %148 : vector<1x96xf32>
    %150 = vector.extract_strided_slice %140 {offsets = [0, 96], sizes = [1, 32], strides = [1, 1]} : vector<1x128xf32> to vector<1x32xf32>
    %151 = math.tanh %150 : vector<1x32xf32>
    %152 = vector.extract_strided_slice %149 {offsets = [0, 0], sizes = [1, 32], strides = [1, 1]} : vector<1x96xf32> to vector<1x32xf32>
    %153 = vector.extract_strided_slice %149 {offsets = [0, 32], sizes = [1, 32], strides = [1, 1]} : vector<1x96xf32> to vector<1x32xf32>
    %154 = vector.extract_strided_slice %149 {offsets = [0, 64], sizes = [1, 32], strides = [1, 1]} : vector<1x96xf32> to vector<1x32xf32>
    %155 = arith.mulf %153, %114 : vector<1x32xf32>
    %156 = arith.mulf %152, %151 : vector<1x32xf32>
    %157 = arith.addf %155, %156 : vector<1x32xf32>
    %158 = math.tanh %157 : vector<1x32xf32>
    %159 = arith.mulf %154, %158 : vector<1x32xf32>
    %160 = arith.truncf %159 : vector<1x32xf32> to vector<1x32xbf16>
    %cst_33 = arith.constant dense<0.000000e+00> : vector<1x256xf32>
    %161 = tpu.matmul %160, %2, %cst_33 {dimension_numbers = #tpu.dot_dimension_numbers<[1], [0], [0], [1], [0, 0, 1, 1], [], []>} : vector<1x32xbf16>, vector<32x256xbf16>, vector<1x256xf32> -> vector<1x256xf32>
    %162 = arith.addf %161, %143 : vector<1x256xf32>
    %163 = vector.extract_strided_slice %162 {offsets = [0, 0], sizes = [1, 192], strides = [1, 1]} : vector<1x256xf32> to vector<1x192xf32>
    %164 = arith.negf %163 : vector<1x192xf32>
    %165 = math.exp %164 : vector<1x192xf32>
    %cst_34 = arith.constant 1.000000e+00 : f32
    %166 = vector.broadcast %cst_34 : f32 to vector<1x192xf32>
    %167 = arith.addf %166, %165 : vector<1x192xf32>
    %168 = arith.divf %166, %167 : vector<1x192xf32>
    %169 = vector.extract_strided_slice %162 {offsets = [0, 192], sizes = [1, 64], strides = [1, 1]} : vector<1x256xf32> to vector<1x64xf32>
    %170 = math.tanh %169 : vector<1x64xf32>
    %171 = vector.extract_strided_slice %168 {offsets = [0, 0], sizes = [1, 64], strides = [1, 1]} : vector<1x192xf32> to vector<1x64xf32>
    %172 = vector.extract_strided_slice %168 {offsets = [0, 64], sizes = [1, 64], strides = [1, 1]} : vector<1x192xf32> to vector<1x64xf32>
    %173 = vector.extract_strided_slice %168 {offsets = [0, 128], sizes = [1, 64], strides = [1, 1]} : vector<1x192xf32> to vector<1x64xf32>
    %174 = arith.mulf %172, %133 : vector<1x64xf32>
    %175 = arith.mulf %171, %170 : vector<1x64xf32>
    %176 = arith.addf %174, %175 : vector<1x64xf32>
    %177 = math.tanh %176 : vector<1x64xf32>
    %178 = arith.mulf %173, %177 : vector<1x64xf32>
    %179 = arith.index_cast %c3_i32 : i32 to index
    %c0_35 = arith.constant 0 : index
    %180 = vector.load %arg8[%179, %c0_35] : memref<8x64xf32, #tpu.memory_space<vmem>>, vector<1x64xf32>
    tpu.vector_store %arg8[%179, %c0_35], %178 {strides = array<i32>} : memref<8x64xf32, #tpu.memory_space<vmem>>, vector<1x64xf32>,
    %c4_i32 = arith.constant 4 : i32
    %181 = arith.truncf %159 : vector<1x32xf32> to vector<1x32xbf16>
    %cst_36 = arith.constant dense<0.000000e+00> : vector<1x128xf32>
    %182 = tpu.matmul %181, %1, %cst_36 {dimension_numbers = #tpu.dot_dimension_numbers<[1], [0], [0], [1], [0, 0, 1, 1], [], []>} : vector<1x32xbf16>, vector<32x128xbf16>, vector<1x128xf32> -> vector<1x128xf32>
    %183 = arith.addf %182, %0 : vector<1x128xf32>
    %184 = arith.truncf %178 : vector<1x64xf32> to vector<1x64xbf16>
    %cst_37 = arith.constant dense<0.000000e+00> : vector<1x256xf32>
    %185 = tpu.matmul %184, %3, %cst_37 {dimension_numbers = #tpu.dot_dimension_numbers<[1], [0], [0], [1], [0, 0, 1, 1], [], []>} : vector<1x64xbf16>, vector<64x256xbf16>, vector<1x256xf32> -> vector<1x256xf32>
    %186 = arith.addf %185, %4 : vector<1x256xf32>
    %187 = vector.extract_strided_slice %183 {offsets = [0, 0], sizes = [1, 96], strides = [1, 1]} : vector<1x128xf32> to vector<1x96xf32>
    %188 = arith.negf %187 : vector<1x96xf32>
    %189 = math.exp %188 : vector<1x96xf32>
    %cst_38 = arith.constant 1.000000e+00 : f32
    %190 = vector.broadcast %cst_38 : f32 to vector<1x96xf32>
    %191 = arith.addf %190, %189 : vector<1x96xf32>
    %192 = arith.divf %190, %191 : vector<1x96xf32>
    %193 = vector.extract_strided_slice %183 {offsets = [0, 96], sizes = [1, 32], strides = [1, 1]} : vector<1x128xf32> to vector<1x32xf32>
    %194 = math.tanh %193 : vector<1x32xf32>
    %195 = vector.extract_strided_slice %192 {offsets = [0, 0], sizes = [1, 32], strides = [1, 1]} : vector<1x96xf32> to vector<1x32xf32>
    %196 = vector.extract_strided_slice %192 {offsets = [0, 32], sizes = [1, 32], strides = [1, 1]} : vector<1x96xf32> to vector<1x32xf32>
    %197 = vector.extract_strided_slice %192 {offsets = [0, 64], sizes = [1, 32], strides = [1, 1]} : vector<1x96xf32> to vector<1x32xf32>
    %198 = arith.mulf %196, %157 : vector<1x32xf32>
    %199 = arith.mulf %195, %194 : vector<1x32xf32>
    %200 = arith.addf %198, %199 : vector<1x32xf32>
    %201 = math.tanh %200 : vector<1x32xf32>
    %202 = arith.mulf %197, %201 : vector<1x32xf32>
    %203 = arith.truncf %202 : vector<1x32xf32> to vector<1x32xbf16>
    %cst_39 = arith.constant dense<0.000000e+00> : vector<1x256xf32>
    %204 = tpu.matmul %203, %2, %cst_39 {dimension_numbers = #tpu.dot_dimension_numbers<[1], [0], [0], [1], [0, 0, 1, 1], [], []>} : vector<1x32xbf16>, vector<32x256xbf16>, vector<1x256xf32> -> vector<1x256xf32>
    %205 = arith.addf %204, %186 : vector<1x256xf32>
    %206 = vector.extract_strided_slice %205 {offsets = [0, 0], sizes = [1, 192], strides = [1, 1]} : vector<1x256xf32> to vector<1x192xf32>
    %207 = arith.negf %206 : vector<1x192xf32>
    %208 = math.exp %207 : vector<1x192xf32>
    %cst_40 = arith.constant 1.000000e+00 : f32
    %209 = vector.broadcast %cst_40 : f32 to vector<1x192xf32>
    %210 = arith.addf %209, %208 : vector<1x192xf32>
    %211 = arith.divf %209, %210 : vector<1x192xf32>
    %212 = vector.extract_strided_slice %205 {offsets = [0, 192], sizes = [1, 64], strides = [1, 1]} : vector<1x256xf32> to vector<1x64xf32>
    %213 = math.tanh %212 : vector<1x64xf32>
    %214 = vector.extract_strided_slice %211 {offsets = [0, 0], sizes = [1, 64], strides = [1, 1]} : vector<1x192xf32> to vector<1x64xf32>
    %215 = vector.extract_strided_slice %211 {offsets = [0, 64], sizes = [1, 64], strides = [1, 1]} : vector<1x192xf32> to vector<1x64xf32>
    %216 = vector.extract_strided_slice %211 {offsets = [0, 128], sizes = [1, 64], strides = [1, 1]} : vector<1x192xf32> to vector<1x64xf32>
    %217 = arith.mulf %215, %176 : vector<1x64xf32>
    %218 = arith.mulf %214, %213 : vector<1x64xf32>
    %219 = arith.addf %217, %218 : vector<1x64xf32>
    %220 = math.tanh %219 : vector<1x64xf32>
    %221 = arith.mulf %216, %220 : vector<1x64xf32>
    %222 = arith.index_cast %c4_i32 : i32 to index
    %c0_41 = arith.constant 0 : index
    %223 = vector.load %arg8[%222, %c0_41] : memref<8x64xf32, #tpu.memory_space<vmem>>, vector<1x64xf32>
    tpu.vector_store %arg8[%222, %c0_41], %221 {strides = array<i32>} : memref<8x64xf32, #tpu.memory_space<vmem>>, vector<1x64xf32>,
    %c5_i32 = arith.constant 5 : i32
    %224 = arith.truncf %202 : vector<1x32xf32> to vector<1x32xbf16>
    %cst_42 = arith.constant dense<0.000000e+00> : vector<1x128xf32>
    %225 = tpu.matmul %224, %1, %cst_42 {dimension_numbers = #tpu.dot_dimension_numbers<[1], [0], [0], [1], [0, 0, 1, 1], [], []>} : vector<1x32xbf16>, vector<32x128xbf16>, vector<1x128xf32> -> vector<1x128xf32>
    %226 = arith.addf %225, %0 : vector<1x128xf32>
    %227 = arith.truncf %221 : vector<1x64xf32> to vector<1x64xbf16>
    %cst_43 = arith.constant dense<0.000000e+00> : vector<1x256xf32>
    %228 = tpu.matmul %227, %3, %cst_43 {dimension_numbers = #tpu.dot_dimension_numbers<[1], [0], [0], [1], [0, 0, 1, 1], [], []>} : vector<1x64xbf16>, vector<64x256xbf16>, vector<1x256xf32> -> vector<1x256xf32>
    %229 = arith.addf %228, %4 : vector<1x256xf32>
    %230 = vector.extract_strided_slice %226 {offsets = [0, 0], sizes = [1, 96], strides = [1, 1]} : vector<1x128xf32> to vector<1x96xf32>
    %231 = arith.negf %230 : vector<1x96xf32>
    %232 = math.exp %231 : vector<1x96xf32>
    %cst_44 = arith.constant 1.000000e+00 : f32
    %233 = vector.broadcast %cst_44 : f32 to vector<1x96xf32>
    %234 = arith.addf %233, %232 : vector<1x96xf32>
    %235 = arith.divf %233, %234 : vector<1x96xf32>
    %236 = vector.extract_strided_slice %226 {offsets = [0, 96], sizes = [1, 32], strides = [1, 1]} : vector<1x128xf32> to vector<1x32xf32>
    %237 = math.tanh %236 : vector<1x32xf32>
    %238 = vector.extract_strided_slice %235 {offsets = [0, 0], sizes = [1, 32], strides = [1, 1]} : vector<1x96xf32> to vector<1x32xf32>
    %239 = vector.extract_strided_slice %235 {offsets = [0, 32], sizes = [1, 32], strides = [1, 1]} : vector<1x96xf32> to vector<1x32xf32>
    %240 = vector.extract_strided_slice %235 {offsets = [0, 64], sizes = [1, 32], strides = [1, 1]} : vector<1x96xf32> to vector<1x32xf32>
    %241 = arith.mulf %239, %200 : vector<1x32xf32>
    %242 = arith.mulf %238, %237 : vector<1x32xf32>
    %243 = arith.addf %241, %242 : vector<1x32xf32>
    %244 = math.tanh %243 : vector<1x32xf32>
    %245 = arith.mulf %240, %244 : vector<1x32xf32>
    %246 = arith.truncf %245 : vector<1x32xf32> to vector<1x32xbf16>
    %cst_45 = arith.constant dense<0.000000e+00> : vector<1x256xf32>
    %247 = tpu.matmul %246, %2, %cst_45 {dimension_numbers = #tpu.dot_dimension_numbers<[1], [0], [0], [1], [0, 0, 1, 1], [], []>} : vector<1x32xbf16>, vector<32x256xbf16>, vector<1x256xf32> -> vector<1x256xf32>
    %248 = arith.addf %247, %229 : vector<1x256xf32>
    %249 = vector.extract_strided_slice %248 {offsets = [0, 0], sizes = [1, 192], strides = [1, 1]} : vector<1x256xf32> to vector<1x192xf32>
    %250 = arith.negf %249 : vector<1x192xf32>
    %251 = math.exp %250 : vector<1x192xf32>
    %cst_46 = arith.constant 1.000000e+00 : f32
    %252 = vector.broadcast %cst_46 : f32 to vector<1x192xf32>
    %253 = arith.addf %252, %251 : vector<1x192xf32>
    %254 = arith.divf %252, %253 : vector<1x192xf32>
    %255 = vector.extract_strided_slice %248 {offsets = [0, 192], sizes = [1, 64], strides = [1, 1]} : vector<1x256xf32> to vector<1x64xf32>
    %256 = math.tanh %255 : vector<1x64xf32>
    %257 = vector.extract_strided_slice %254 {offsets = [0, 0], sizes = [1, 64], strides = [1, 1]} : vector<1x192xf32> to vector<1x64xf32>
    %258 = vector.extract_strided_slice %254 {offsets = [0, 64], sizes = [1, 64], strides = [1, 1]} : vector<1x192xf32> to vector<1x64xf32>
    %259 = vector.extract_strided_slice %254 {offsets = [0, 128], sizes = [1, 64], strides = [1, 1]} : vector<1x192xf32> to vector<1x64xf32>
    %260 = arith.mulf %258, %219 : vector<1x64xf32>
    %261 = arith.mulf %257, %256 : vector<1x64xf32>
    %262 = arith.addf %260, %261 : vector<1x64xf32>
    %263 = math.tanh %262 : vector<1x64xf32>
    %264 = arith.mulf %259, %263 : vector<1x64xf32>
    %265 = arith.index_cast %c5_i32 : i32 to index
    %c0_47 = arith.constant 0 : index
    %266 = vector.load %arg8[%265, %c0_47] : memref<8x64xf32, #tpu.memory_space<vmem>>, vector<1x64xf32>
    tpu.vector_store %arg8[%265, %c0_47], %264 {strides = array<i32>} : memref<8x64xf32, #tpu.memory_space<vmem>>, vector<1x64xf32>,
    %c6_i32 = arith.constant 6 : i32
    %267 = arith.truncf %245 : vector<1x32xf32> to vector<1x32xbf16>
    %cst_48 = arith.constant dense<0.000000e+00> : vector<1x128xf32>
    %268 = tpu.matmul %267, %1, %cst_48 {dimension_numbers = #tpu.dot_dimension_numbers<[1], [0], [0], [1], [0, 0, 1, 1], [], []>} : vector<1x32xbf16>, vector<32x128xbf16>, vector<1x128xf32> -> vector<1x128xf32>
    %269 = arith.addf %268, %0 : vector<1x128xf32>
    %270 = arith.truncf %264 : vector<1x64xf32> to vector<1x64xbf16>
    %cst_49 = arith.constant dense<0.000000e+00> : vector<1x256xf32>
    %271 = tpu.matmul %270, %3, %cst_49 {dimension_numbers = #tpu.dot_dimension_numbers<[1], [0], [0], [1], [0, 0, 1, 1], [], []>} : vector<1x64xbf16>, vector<64x256xbf16>, vector<1x256xf32> -> vector<1x256xf32>
    %272 = arith.addf %271, %4 : vector<1x256xf32>
    %273 = vector.extract_strided_slice %269 {offsets = [0, 0], sizes = [1, 96], strides = [1, 1]} : vector<1x128xf32> to vector<1x96xf32>
    %274 = arith.negf %273 : vector<1x96xf32>
    %275 = math.exp %274 : vector<1x96xf32>
    %cst_50 = arith.constant 1.000000e+00 : f32
    %276 = vector.broadcast %cst_50 : f32 to vector<1x96xf32>
    %277 = arith.addf %276, %275 : vector<1x96xf32>
    %278 = arith.divf %276, %277 : vector<1x96xf32>
    %279 = vector.extract_strided_slice %269 {offsets = [0, 96], sizes = [1, 32], strides = [1, 1]} : vector<1x128xf32> to vector<1x32xf32>
    %280 = math.tanh %279 : vector<1x32xf32>
    %281 = vector.extract_strided_slice %278 {offsets = [0, 0], sizes = [1, 32], strides = [1, 1]} : vector<1x96xf32> to vector<1x32xf32>
    %282 = vector.extract_strided_slice %278 {offsets = [0, 32], sizes = [1, 32], strides = [1, 1]} : vector<1x96xf32> to vector<1x32xf32>
    %283 = vector.extract_strided_slice %278 {offsets = [0, 64], sizes = [1, 32], strides = [1, 1]} : vector<1x96xf32> to vector<1x32xf32>
    %284 = arith.mulf %282, %243 : vector<1x32xf32>
    %285 = arith.mulf %281, %280 : vector<1x32xf32>
    %286 = arith.addf %284, %285 : vector<1x32xf32>
    %287 = math.tanh %286 : vector<1x32xf32>
    %288 = arith.mulf %283, %287 : vector<1x32xf32>
    %289 = arith.truncf %288 : vector<1x32xf32> to vector<1x32xbf16>
    %cst_51 = arith.constant dense<0.000000e+00> : vector<1x256xf32>
    %290 = tpu.matmul %289, %2, %cst_51 {dimension_numbers = #tpu.dot_dimension_numbers<[1], [0], [0], [1], [0, 0, 1, 1], [], []>} : vector<1x32xbf16>, vector<32x256xbf16>, vector<1x256xf32> -> vector<1x256xf32>
    %291 = arith.addf %290, %272 : vector<1x256xf32>
    %292 = vector.extract_strided_slice %291 {offsets = [0, 0], sizes = [1, 192], strides = [1, 1]} : vector<1x256xf32> to vector<1x192xf32>
    %293 = arith.negf %292 : vector<1x192xf32>
    %294 = math.exp %293 : vector<1x192xf32>
    %cst_52 = arith.constant 1.000000e+00 : f32
    %295 = vector.broadcast %cst_52 : f32 to vector<1x192xf32>
    %296 = arith.addf %295, %294 : vector<1x192xf32>
    %297 = arith.divf %295, %296 : vector<1x192xf32>
    %298 = vector.extract_strided_slice %291 {offsets = [0, 192], sizes = [1, 64], strides = [1, 1]} : vector<1x256xf32> to vector<1x64xf32>
    %299 = math.tanh %298 : vector<1x64xf32>
    %300 = vector.extract_strided_slice %297 {offsets = [0, 0], sizes = [1, 64], strides = [1, 1]} : vector<1x192xf32> to vector<1x64xf32>
    %301 = vector.extract_strided_slice %297 {offsets = [0, 64], sizes = [1, 64], strides = [1, 1]} : vector<1x192xf32> to vector<1x64xf32>
    %302 = vector.extract_strided_slice %297 {offsets = [0, 128], sizes = [1, 64], strides = [1, 1]} : vector<1x192xf32> to vector<1x64xf32>
    %303 = arith.mulf %301, %262 : vector<1x64xf32>
    %304 = arith.mulf %300, %299 : vector<1x64xf32>
    %305 = arith.addf %303, %304 : vector<1x64xf32>
    %306 = math.tanh %305 : vector<1x64xf32>
    %307 = arith.mulf %302, %306 : vector<1x64xf32>
    %308 = arith.index_cast %c6_i32 : i32 to index
    %c0_53 = arith.constant 0 : index
    %309 = vector.load %arg8[%308, %c0_53] : memref<8x64xf32, #tpu.memory_space<vmem>>, vector<1x64xf32>
    tpu.vector_store %arg8[%308, %c0_53], %307 {strides = array<i32>} : memref<8x64xf32, #tpu.memory_space<vmem>>, vector<1x64xf32>,
    %c7_i32 = arith.constant 7 : i32
    %310 = arith.truncf %288 : vector<1x32xf32> to vector<1x32xbf16>
    %cst_54 = arith.constant dense<0.000000e+00> : vector<1x128xf32>
    %311 = tpu.matmul %310, %1, %cst_54 {dimension_numbers = #tpu.dot_dimension_numbers<[1], [0], [0], [1], [0, 0, 1, 1], [], []>} : vector<1x32xbf16>, vector<32x128xbf16>, vector<1x128xf32> -> vector<1x128xf32>
    %312 = arith.addf %311, %0 : vector<1x128xf32>
    %313 = arith.truncf %307 : vector<1x64xf32> to vector<1x64xbf16>
    %cst_55 = arith.constant dense<0.000000e+00> : vector<1x256xf32>
    %314 = tpu.matmul %313, %3, %cst_55 {dimension_numbers = #tpu.dot_dimension_numbers<[1], [0], [0], [1], [0, 0, 1, 1], [], []>} : vector<1x64xbf16>, vector<64x256xbf16>, vector<1x256xf32> -> vector<1x256xf32>
    %315 = arith.addf %314, %4 : vector<1x256xf32>
    %316 = vector.extract_strided_slice %312 {offsets = [0, 0], sizes = [1, 96], strides = [1, 1]} : vector<1x128xf32> to vector<1x96xf32>
    %317 = arith.negf %316 : vector<1x96xf32>
    %318 = math.exp %317 : vector<1x96xf32>
    %cst_56 = arith.constant 1.000000e+00 : f32
    %319 = vector.broadcast %cst_56 : f32 to vector<1x96xf32>
    %320 = arith.addf %319, %318 : vector<1x96xf32>
    %321 = arith.divf %319, %320 : vector<1x96xf32>
    %322 = vector.extract_strided_slice %312 {offsets = [0, 96], sizes = [1, 32], strides = [1, 1]} : vector<1x128xf32> to vector<1x32xf32>
    %323 = math.tanh %322 : vector<1x32xf32>
    %324 = vector.extract_strided_slice %321 {offsets = [0, 0], sizes = [1, 32], strides = [1, 1]} : vector<1x96xf32> to vector<1x32xf32>
    %325 = vector.extract_strided_slice %321 {offsets = [0, 32], sizes = [1, 32], strides = [1, 1]} : vector<1x96xf32> to vector<1x32xf32>
    %326 = vector.extract_strided_slice %321 {offsets = [0, 64], sizes = [1, 32], strides = [1, 1]} : vector<1x96xf32> to vector<1x32xf32>
    %327 = arith.mulf %325, %286 : vector<1x32xf32>
    %328 = arith.mulf %324, %323 : vector<1x32xf32>
    %329 = arith.addf %327, %328 : vector<1x32xf32>
    %330 = math.tanh %329 : vector<1x32xf32>
    %331 = arith.mulf %326, %330 : vector<1x32xf32>
    %332 = arith.truncf %331 : vector<1x32xf32> to vector<1x32xbf16>
    %cst_57 = arith.constant dense<0.000000e+00> : vector<1x256xf32>
    %333 = tpu.matmul %332, %2, %cst_57 {dimension_numbers = #tpu.dot_dimension_numbers<[1], [0], [0], [1], [0, 0, 1, 1], [], []>} : vector<1x32xbf16>, vector<32x256xbf16>, vector<1x256xf32> -> vector<1x256xf32>
    %334 = arith.addf %333, %315 : vector<1x256xf32>
    %335 = vector.extract_strided_slice %334 {offsets = [0, 0], sizes = [1, 192], strides = [1, 1]} : vector<1x256xf32> to vector<1x192xf32>
    %336 = arith.negf %335 : vector<1x192xf32>
    %337 = math.exp %336 : vector<1x192xf32>
    %cst_58 = arith.constant 1.000000e+00 : f32
    %338 = vector.broadcast %cst_58 : f32 to vector<1x192xf32>
    %339 = arith.addf %338, %337 : vector<1x192xf32>
    %340 = arith.divf %338, %339 : vector<1x192xf32>
    %341 = vector.extract_strided_slice %334 {offsets = [0, 192], sizes = [1, 64], strides = [1, 1]} : vector<1x256xf32> to vector<1x64xf32>
    %342 = math.tanh %341 : vector<1x64xf32>
    %343 = vector.extract_strided_slice %340 {offsets = [0, 0], sizes = [1, 64], strides = [1, 1]} : vector<1x192xf32> to vector<1x64xf32>
    %344 = vector.extract_strided_slice %340 {offsets = [0, 64], sizes = [1, 64], strides = [1, 1]} : vector<1x192xf32> to vector<1x64xf32>
    %345 = vector.extract_strided_slice %340 {offsets = [0, 128], sizes = [1, 64], strides = [1, 1]} : vector<1x192xf32> to vector<1x64xf32>
    %346 = arith.mulf %344, %305 : vector<1x64xf32>
    %347 = arith.mulf %343, %342 : vector<1x64xf32>
    %348 = arith.addf %346, %347 : vector<1x64xf32>
    %349 = math.tanh %348 : vector<1x64xf32>
    %350 = arith.mulf %345, %349 : vector<1x64xf32>
    %351 = arith.index_cast %c7_i32 : i32 to index
    %c0_59 = arith.constant 0 : index
    %352 = vector.load %arg8[%351, %c0_59] : memref<8x64xf32, #tpu.memory_space<vmem>>, vector<1x64xf32>
    tpu.vector_store %arg8[%351, %c0_59], %350 {strides = array<i32>} : memref<8x64xf32, #tpu.memory_space<vmem>>, vector<1x64xf32>,
    %c8_i32 = arith.constant 8 : i32
    %c0_60 = arith.constant 0 : index
    %c0_61 = arith.constant 0 : index
    %353 = vector.load %arg8[%c0_60, %c0_61] : memref<8x64xf32, #tpu.memory_space<vmem>>, vector<8x64xf32>
    %c0_62 = arith.constant 0 : index
    %c0_63 = arith.constant 0 : index
    %354 = vector.load %arg5[%c0_62, %c0_63] : memref<1x64xf32, #tpu.memory_space<vmem>>, vector<1x64xf32>
    %355 = vector.broadcast %354 : vector<1x64xf32> to vector<8x64xf32>
    %356 = arith.mulf %353, %355 : vector<8x64xf32>
    %cst_64 = arith.constant dense<0.000000e+00> : vector<8xf32>
    %357 = vector.multi_reduction <add>, %356, %cst_64 [1] : vector<8x64xf32> to vector<8xf32>
    %358 = vector.shape_cast %357 : vector<8xf32> to vector<8x1xf32>
    %c0_65 = arith.constant 0 : index
    %c0_66 = arith.constant 0 : index
    %359 = vector.load %arg6[%c0_65, %c0_66] : memref<1x1xf32, #tpu.memory_space<vmem>>, vector<1x1xf32>
    %360 = vector.broadcast %359 : vector<1x1xf32> to vector<8x1xf32>
    %361 = arith.addf %358, %360 : vector<8x1xf32>
    %c0_67 = arith.constant 0 : index
    %c0_68 = arith.constant 0 : index
    %362 = vector.load %arg7[%c0_67, %c0_68] : memref<8x1xf32, #tpu.memory_space<vmem>>, vector<8x1xf32>
    tpu.vector_store %arg7[%c0_67, %c0_68], %361 {strides = array<i32>} : memref<8x1xf32, #tpu.memory_space<vmem>>, vector<8x1xf32>,
    return
  }
}

</mosaic_0001>

<llo_original>
// kernel: tpu_custom_call.1
$region0: #{tpu_custom_call.1}
  #allocation0 [shape = 'u32[]', space=smem, size = 0x4, offset = 0x4, fixed_abs, tag = 'smem constant byte address 0x4 - core index']
  #allocation1 [shape = 'u32[144,128]{1,0:T(1,128)}', space=vmem, size = 0x12000, scoped, tag = 'internal scratch']
  #allocation2 [shape = 'f32[8,64]{1,0:T(8,128)}', space=vmem, size = 0x1000, scoped, tag = 'scratch operand']
  #allocation3 [shape = 'f32[1,1]{1,0:T(1,128)S(1)}', space=vmem, size = 0x200, scoped, tag = 'scoped memory for tpu_custom_call.1']
  %s0 = inlined_call_operand.vmem [shape: f32[1,128], index: 0, kind: input, shape index: {}]
  %s1 = inlined_call_operand.hbm [shape: bf16[32,128], index: 1, kind: input, shape index: {}]
  %s2 = inlined_call_operand.hbm [shape: bf16[32,256], index: 2, kind: input, shape index: {}]
  %s3 = inlined_call_operand.hbm [shape: bf16[64,256], index: 3, kind: input, shape index: {}]
  %s4 = inlined_call_operand.vmem [shape: f32[1,256], index: 4, kind: input, shape index: {}]
  %s5 = inlined_call_operand.vmem [shape: f32[1,64], index: 5, kind: input, shape index: {}]
  %s6 = inlined_call_operand.<no memory space> [shape: f32[1,1], index: 6, kind: input, shape index: {}]
  %s7 = inlined_call_operand.vmem [shape: f32[8,1], index: 7, kind: output, shape index: {}]
  %s8 = sld [smem:[#allocation0]]
  $region50: #{tpu_custom_call.1} parent=0
    _
  %s10 = ssub.s32 1, %s8
  %s11 = scalar_select 0, %s10, %s8
  %v12 = vstv %s6
  %13 = vst [vmem:[#allocation3] sm:$0x1] %v12
  $region1: #{tpu_custom_call.1} parent=0
    #allocation4 [shape = 'u8[8192]{0}', space=vmem, size = 0x2000, scoped, tag = 'input window, operand 1, single buffered']
    #allocation5 [shape = 's32[1]{0}', space=sflag, size = 0x4, scoped, tag = 'scoped memory for tpu_custom_call.1']
    #allocation6 [shape = 'u8[16384]{0}', space=vmem, size = 0x4000, scoped, tag = 'input window, operand 2, single buffered']
    #allocation7 [shape = 's32[1]{0}', space=sflag, size = 0x4, scoped, tag = 'scoped memory for tpu_custom_call.1']
    #allocation8 [shape = 'u8[32768]{0}', space=vmem, size = 0x8000, scoped, tag = 'input window, operand 3, single buffered']
    %14 = vsyncpa [#allocation5], 0
    %15 = vsyncpa [#allocation7], 0
    // Predicated region
    $region2: #{tpu_custom_call.1} parent=1 // pred_check
      _
    $region3: #{tpu_custom_call.1} parent=1 // pred_check_branch
      %17 = sbr.rel (0) target = $region5
    $region4: #{tpu_custom_call.1} parent=1 // pred_region
      _
    $region5: #{tpu_custom_call.1} parent=1 // pred_fallthru
      _
    // Predicated region
    $region6: #{tpu_custom_call.1} parent=1 // pred_check
      _
    $region7: #{tpu_custom_call.1} parent=1 // pred_check_branch
      %19 = sbr.rel (0) target = $region9
    $region8: #{tpu_custom_call.1} parent=1 // pred_region
      %s21 = ssub.s32 256, 256
      %22 = vsyncadd [#allocation5], %s21
      %s23 = sshll.u32 [#allocation4], 4
      %s24 = int_to_ptr.vmem [resolvable:$true] %s23
      %29 = dma.hbm_to_vmem [thread:$0]  %s1, 256, %s24, [#allocation5], 64, 64, 4
    $region9: #{tpu_custom_call.1} parent=1 // pred_fallthru
      _
    // Predicated region
    $region10: #{tpu_custom_call.1} parent=1 // pred_check
      _
    $region11: #{tpu_custom_call.1} parent=1 // pred_check_branch
      %31 = sbr.rel (0) target = $region13
    $region12: #{tpu_custom_call.1} parent=1 // pred_region
      %s33 = ssub.s32 512, 512
      %34 = vsyncadd [#allocation7], %s33
      %s35 = sshll.u32 [#allocation6], 4
      %s36 = int_to_ptr.vmem [resolvable:$true] %s35
      %41 = dma.hbm_to_vmem [thread:$0]  %s2, 512, %s36, [#allocation7], 128, 128, 8
    $region13: #{tpu_custom_call.1} parent=1 // pred_fallthru
      _
    // Predicated region
    $region14: #{tpu_custom_call.1} parent=1 // pred_check
      _
    $region15: #{tpu_custom_call.1} parent=1 // pred_check_branch
      %43 = sbr.rel (0) target = $region17
    $region16: #{tpu_custom_call.1} parent=1 // pred_region
      %s45 = ssub.s32 1024, 1024
      %46 = vsyncadd [#allocation7], %s45
      %s47 = sshll.u32 [#allocation8], 4
      %s48 = int_to_ptr.vmem [resolvable:$true] %s47
      %53 = dma.hbm_to_vmem [thread:$0]  %s3, 1024, %s48, [#allocation7], 128, 128, 8
    $region17: #{tpu_custom_call.1} parent=1 // pred_fallthru
      _
    // Predicated region
    $region18: #{tpu_custom_call.1} parent=1 // pred_check
      _
    $region19: #{tpu_custom_call.1} parent=1 // pred_check_branch
      %55 = sbr.rel (0) target = $region21
    $region20: #{tpu_custom_call.1} parent=1 // pred_region
      _
    $region21: #{tpu_custom_call.1} parent=1 // pred_fallthru
      _
    // Predicated region
    $region22: #{tpu_custom_call.1} parent=1 // pred_check
      _
    $region23: #{tpu_custom_call.1} parent=1 // pred_check_branch
      %57 = sbr.rel (0) target = $region25
    $region24: #{tpu_custom_call.1} parent=1 // pred_region
      _
    $region25: #{tpu_custom_call.1} parent=1 // pred_fallthru
      _
    // Predicated region
    $region26: #{tpu_custom_call.1} parent=1 // pred_check
      _
    $region27: #{tpu_custom_call.1} parent=1 // pred_check_branch
      %59 = sbr.rel (0) target = $region29
    $region28: #{tpu_custom_call.1} parent=1 // pred_region
      _
    $region29: #{tpu_custom_call.1} parent=1 // pred_fallthru
      _
    // Predicated region
    $region30: #{tpu_custom_call.1} parent=1 // pred_check
      _
    $region31: #{tpu_custom_call.1} parent=1 // pred_check_branch
      %61 = sbr.rel (0) target = $region33
    $region32: #{tpu_custom_call.1} parent=1 // pred_region
      %62 = dma.done [#allocation5], 256
    $region33: #{tpu_custom_call.1} parent=1 // pred_fallthru
      _
    // Predicated region
    $region34: #{tpu_custom_call.1} parent=1 // pred_check
      _
    $region35: #{tpu_custom_call.1} parent=1 // pred_check_branch
      %64 = sbr.rel (0) target = $region37
    $region36: #{tpu_custom_call.1} parent=1 // pred_region
      %65 = dma.done [#allocation7], 512
    $region37: #{tpu_custom_call.1} parent=1 // pred_fallthru
      _
    // Predicated region
    $region38: #{tpu_custom_call.1} parent=1 // pred_check
      _
    $region39: #{tpu_custom_call.1} parent=1 // pred_check_branch
      %67 = sbr.rel (0) target = $region41
    $region40: #{tpu_custom_call.1} parent=1 // pred_region
      %68 = dma.done [#allocation7], 1024
    $region41: #{tpu_custom_call.1} parent=1 // pred_fallthru
      _
    %v70 = vld [vmem:[%s0] sm:$0x1]
    %v71 = vld [vmem:[#allocation4] sm:$0xf]
    %v72 = vld [vmem:[#allocation4 + $0x4] sm:$0xf]
    %v73 = vld [vmem:[#allocation4 + $0x8] sm:$0xf]
    %v74 = vld [vmem:[#allocation4 + $0xc] sm:$0xf]
    %v75 = vld [vmem:[#allocation6] sm:$0xff]
    %v76 = vld [vmem:[#allocation6 + $0x8] sm:$0xff]
    %v77 = vld [vmem:[#allocation6 + $0x10] sm:$0xff]
    %v78 = vld [vmem:[#allocation6 + $0x18] sm:$0xff]
    %v79 = vld [vmem:[#allocation8] sm:$0xff]
    %v80 = vld [vmem:[#allocation8 + $0x8] sm:$0xff]
    %v81 = vld [vmem:[#allocation8 + $0x10] sm:$0xff]
    %v82 = vld [vmem:[#allocation8 + $0x18] sm:$0xff]
    %v83 = vld [vmem:[#allocation8 + $0x20] sm:$0xff]
    %v84 = vld [vmem:[#allocation8 + $0x28] sm:$0xff]
    %v85 = vld [vmem:[#allocation8 + $0x30] sm:$0xff]
    %v86 = vld [vmem:[#allocation8 + $0x38] sm:$0xff]
    %v87 = vld [vmem:[%s4] sm:$0x3]
    %v92 = vunpack.c.l.b16 %v71
    %v93 = vunpack.c.l.b16 %v72
    %v94 = vunpack.c.l.b16 %v73
    %v95 = vunpack.c.l.b16 %v74
    %v96 = vpack.c.b16 %v93, %v92
    %v97 = vpack.c.b16 %v95, %v94
    %vm100 = vcmask 261120
    %v102 = vsel %vm100, 0, 0
    %104 = vmatprep.subr.bf16.mxu0 0
    %105 = vmatpush1.bf16.msra.mxu0 %v96
    %106 = vmatprep.subr.bf16.mxu0 0
    %107 = vmatpush1.bf16.msra.mxu0 %v97
    %108 = vmatprep.subr.bf16.mxu0 0
    %109 = vmatpush1.bf16.msra.mxu0 0
    %110 = vmatprep.subr.bf16.mxu0 0
    %111 = vmatpush1.bf16.msra.mxu0 0
    %112 = vmatprep.subr.bf16.mxu0 0
    %113 = vmatpush1.bf16.msra.mxu0 0
    %114 = vmatprep.subr.bf16.mxu0 0
    %115 = vmatpush1.bf16.msra.mxu0 0
    %116 = vmatprep.subr.bf16.mxu0 0
    %117 = vmatpush1.bf16.msra.mxu0 0
    %118 = vmatprep.subr.bf16.mxu0 0
    %119 = vmatpush1.bf16.msra.mxu0 0
    %120 = vmatprep.subr.bf16.mxu0 0
    %121 = vmatpush1.bf16.msra.mxu0 0
    %122 = vmatprep.subr.bf16.mxu0 0
    %123 = vmatpush1.bf16.msra.mxu0 0
    %124 = vmatprep.subr.bf16.mxu0 0
    %125 = vmatpush1.bf16.msra.mxu0 0
    %126 = vmatprep.subr.bf16.mxu0 0
    %127 = vmatpush1.bf16.msra.mxu0 0
    %128 = vmatprep.subr.bf16.mxu0 0
    %129 = vmatpush1.bf16.msra.mxu0 0
    %130 = vmatprep.subr.bf16.mxu0 0
    %131 = vmatpush1.bf16.msra.mxu0 0
    %132 = vmatprep.subr.bf16.mxu0 0
    %133 = vmatpush1.bf16.msra.mxu0 0
    %134 = vmatprep.subr.bf16.mxu0 0
    %135 = vmatpush1.bf16.msra.mxu0 0
    %136 = vmatprep.mubr.bf16.mxu0 0
    %137 = vmatmul.mubr.bf16.gmra.mrb[0].mxu0 %v102
    %v138 = vpop.f32.mrb[0].mxu0
    %v139 = vadd.f32 %v70, %v138
    %v140 = vpop.f32.mrb[0].mxu0
    %v141 = vpop.f32.mrb[0].mxu0
    %v142 = vpop.f32.mrb[0].mxu0
    %143 = vdwg.mxu0
    %v152 = vunpack.c.l.b16 %v79
    %v153 = vunpack.c.h.b16 %v79
    %v154 = vunpack.c.l.b16 %v80
    %v155 = vunpack.c.h.b16 %v80
    %v156 = vunpack.c.l.b16 %v81
    %v157 = vunpack.c.h.b16 %v81
    %v158 = vunpack.c.l.b16 %v82
    %v159 = vunpack.c.h.b16 %v82
    %v160 = vunpack.c.l.b16 %v83
    %v161 = vunpack.c.h.b16 %v83
    %v162 = vunpack.c.l.b16 %v84
    %v163 = vunpack.c.h.b16 %v84
    %v164 = vunpack.c.l.b16 %v85
    %v165 = vunpack.c.h.b16 %v85
    %v166 = vunpack.c.l.b16 %v86
    %v167 = vunpack.c.h.b16 %v86
    %v168 = vpack.c.b16 %v154, %v152
    %v169 = vpack.c.b16 %v155, %v153
    %v170 = vpack.c.b16 %v158, %v156
    %v171 = vpack.c.b16 %v159, %v157
    %v172 = vpack.c.b16 %v162, %v160
    %v173 = vpack.c.b16 %v163, %v161
    %v174 = vpack.c.b16 %v166, %v164
    %v175 = vpack.c.b16 %v167, %v165
    %v185 = vlaneseq
    %v186 = vshrl.u32 %v185, 7
    %v187 = vsub.s32 0, %v186
    %v188 = vrot.slane %v87, %v187
    %v189 = vlaneseq
    %v190 = vshrl.u32 %v189, 7
    %v191 = vsub.s32 1, %v190
    %v192 = vrot.slane %v87, %v191
    %vm195 = vcmask 523264
    %v196 = vsel %vm195, 0, 0
    %198 = vmatprep.subr.bf16.mxu0 %v169
    %199 = vmatpush1.bf16.msra.mxu0 %v168
    %200 = vmatprep.subr.bf16.mxu0 %v171
    %201 = vmatpush1.bf16.msra.mxu0 %v170
    %202 = vmatprep.subr.bf16.mxu0 %v173
    %203 = vmatpush1.bf16.msra.mxu0 %v172
    %204 = vmatprep.subr.bf16.mxu0 %v175
    %205 = vmatpush1.bf16.msra.mxu0 %v174
    %206 = vmatprep.subr.bf16.mxu0 0
    %207 = vmatpush1.bf16.msra.mxu0 0
    %208 = vmatprep.subr.bf16.mxu0 0
    %209 = vmatpush1.bf16.msra.mxu0 0
    %210 = vmatprep.subr.bf16.mxu0 0
    %211 = vmatpush1.bf16.msra.mxu0 0
    %212 = vmatprep.subr.bf16.mxu0 0
    %213 = vmatpush1.bf16.msra.mxu0 0
    %214 = vmatprep.subr.bf16.mxu0 0
    %215 = vmatpush1.bf16.msra.mxu0 0
    %216 = vmatprep.subr.bf16.mxu0 0
    %217 = vmatpush1.bf16.msra.mxu0 0
    %218 = vmatprep.subr.bf16.mxu0 0
    %219 = vmatpush1.bf16.msra.mxu0 0
    %220 = vmatprep.subr.bf16.mxu0 0
    %221 = vmatpush1.bf16.msra.mxu0 0
    %222 = vmatprep.subr.bf16.mxu0 0
    %223 = vmatpush1.bf16.msra.mxu0 0
    %224 = vmatprep.subr.bf16.mxu0 0
    %225 = vmatpush1.bf16.msra.mxu0 0
    %226 = vmatprep.subr.bf16.mxu0 0
    %227 = vmatpush1.bf16.msra.mxu0 0
    %228 = vmatprep.subr.bf16.mxu0 0
    %229 = vmatpush1.bf16.msra.mxu0 0
    %230 = vmatprep.mubr.bf16.mxu0 0
    %231 = vmatmul.mubr.bf16.gmra.mrb[0].mxu0 %v196
    %v232 = vpop.f32.mrb[0].mxu0
    %v233 = vadd.f32 %v188, %v232
    %v234 = vpop.f32.mrb[0].mxu0
    %v235 = vadd.f32 %v192, %v234
    %v236 = vpop.f32.mrb[0].mxu0
    %v237 = vpop.f32.mrb[0].mxu0
    %238 = vdwg.mxu0
    %v239 = vxor.u32 %v139, 2147483648
    %v240 = vmul.f32 %v239, 1.442695
    %v241 = vpow.pop %v240
    %v242 = vadd.f32 %v241, 1.0
    %v243 = vrcp.pop %v242
    %v244 = vmul.f32 1.0, %v243
    %v245 = vtanh.pop %v139
    %v246 = vmul.f32 %v244, 0.0
    %248 = vrot.lane.b32.xlu0 %v245, 32
    %v249 = vpop.permute.xlu0 %248
    %v251 = vmul.f32 %v244, %v249
    %253 = vrot.lane.b32.xlu0 %v251, 32
    %v254 = vpop.permute.xlu0 %253
    %v256 = vadd.f32 %v246, %v254
    %v257 = vtanh.pop %v256
    %259 = vrot.lane.b32.xlu0 %v257, 32
    %v260 = vpop.permute.xlu0 %259
    %v262 = vmul.f32 %v244, %v260
    %v263 = vpack.c.bf16 %v262, %v262
    %265 = vrot.lane.b32.xlu0 %v263, 64
    %v266 = vpop.permute.xlu0 %265
    %v271 = vunpack.c.l.b16 %v75
    %v272 = vunpack.c.h.b16 %v75
    %v273 = vunpack.c.l.b16 %v76
    %v274 = vunpack.c.h.b16 %v76
    %v275 = vunpack.c.l.b16 %v77
    %v276 = vunpack.c.h.b16 %v77
    %v277 = vunpack.c.l.b16 %v78
    %v278 = vunpack.c.h.b16 %v78
    %v279 = vpack.c.b16 %v273, %v271
    %v280 = vpack.c.b16 %v274, %v272
    %v281 = vpack.c.b16 %v277, %v275
    %v282 = vpack.c.b16 %v278, %v276
    %v288 = vsel %vm100, %v266, 0
    %290 = vmatprep.subr.bf16.mxu0 %v280
    %291 = vmatpush1.bf16.msra.mxu0 %v279
    %292 = vmatprep.subr.bf16.mxu0 %v282
    %293 = vmatpush1.bf16.msra.mxu0 %v281
    %294 = vmatprep.subr.bf16.mxu0 0
    %295 = vmatpush1.bf16.msra.mxu0 0
    %296 = vmatprep.subr.bf16.mxu0 0
    %297 = vmatpush1.bf16.msra.mxu0 0
    %298 = vmatprep.subr.bf16.mxu0 0
    %299 = vmatpush1.bf16.msra.mxu0 0
    %300 = vmatprep.subr.bf16.mxu0 0
    %301 = vmatpush1.bf16.msra.mxu0 0
    %302 = vmatprep.subr.bf16.mxu0 0
    %303 = vmatpush1.bf16.msra.mxu0 0
    %304 = vmatprep.subr.bf16.mxu0 0
    %305 = vmatpush1.bf16.msra.mxu0 0
    %306 = vmatprep.subr.bf16.mxu0 0
    %307 = vmatpush1.bf16.msra.mxu0 0
    %308 = vmatprep.subr.bf16.mxu0 0
    %309 = vmatpush1.bf16.msra.mxu0 0
    %310 = vmatprep.subr.bf16.mxu0 0
    %311 = vmatpush1.bf16.msra.mxu0 0
    %312 = vmatprep.subr.bf16.mxu0 0
    %313 = vmatpush1.bf16.msra.mxu0 0
    %314 = vmatprep.subr.bf16.mxu0 0
    %315 = vmatpush1.bf16.msra.mxu0 0
    %316 = vmatprep.subr.bf16.mxu0 0
    %317 = vmatpush1.bf16.msra.mxu0 0
    %318 = vmatprep.subr.bf16.mxu0 0
    %319 = vmatpush1.bf16.msra.mxu0 0
    %320 = vmatprep.subr.bf16.mxu0 0
    %321 = vmatpush1.bf16.msra.mxu0 0
    %322 = vmatprep.mubr.bf16.mxu0 0
    %323 = vmatmul.mubr.bf16.gmra.mrb[0].mxu0 %v288
    %v324 = vpop.f32.mrb[0].mxu0
    %v325 = vadd.f32 %v233, %v324
    %v326 = vpop.f32.mrb[0].mxu0
    %v327 = vadd.f32 %v235, %v326
    %v328 = vpop.f32.mrb[0].mxu0
    %v329 = vpop.f32.mrb[0].mxu0
    %330 = vdwg.mxu0
    %v331 = vxor.u32 %v325, 2147483648
    %v332 = vxor.u32 %v327, 2147483648
    %v333 = vmul.f32 %v331, 1.442695
    %v334 = vpow.pop %v333
    %v335 = vmul.f32 %v332, 1.442695
    %v336 = vpow.pop %v335
    %v337 = vadd.f32 %v334, 1.0
    %v338 = vadd.f32 %v336, 1.0
    %v339 = vrcp.pop %v337
    %v340 = vmul.f32 1.0, %v339
    %v341 = vrcp.pop %v338
    %v342 = vmul.f32 1.0, %v341
    %v343 = vtanh.pop %v327
    %v344 = vmul.f32 %v340, 0.0
    %346 = vrot.lane.b32.xlu0 %v343, 64
    %v347 = vpop.permute.xlu0 %346
    %v349 = vmul.f32 %v340, %v347
    %351 = vrot.lane.b32.xlu0 %v349, 64
    %v352 = vpop.permute.xlu0 %351
    %v354 = vadd.f32 %v344, %v352
    %v355 = vtanh.pop %v354
    %357 = vrot.lane.b32.xlu0 %v355, 64
    %v358 = vpop.permute.xlu0 %357
    %v360 = vmul.f32 %v342, %v358
    %vm361 = vcmask 516096
    %362 = vst.msk [vmem:[#allocation2] sm:$0x1] %vm361, %v360
    %363 = vmatprep.subr.bf16.mxu0 0
    %364 = vmatpush1.bf16.msra.mxu0 %v96
    %365 = vmatprep.subr.bf16.mxu0 0
    %366 = vmatpush1.bf16.msra.mxu0 %v97
    %367 = vmatprep.subr.bf16.mxu0 0
    %368 = vmatpush1.bf16.msra.mxu0 0
    %369 = vmatprep.subr.bf16.mxu0 0
    %370 = vmatpush1.bf16.msra.mxu0 0
    %371 = vmatprep.subr.bf16.mxu0 0
    %372 = vmatpush1.bf16.msra.mxu0 0
    %373 = vmatprep.subr.bf16.mxu0 0
    %374 = vmatpush1.bf16.msra.mxu0 0
    %375 = vmatprep.subr.bf16.mxu0 0
    %376 = vmatpush1.bf16.msra.mxu0 0
    %377 = vmatprep.subr.bf16.mxu0 0
    %378 = vmatpush1.bf16.msra.mxu0 0
    %379 = vmatprep.subr.bf16.mxu0 0
    %380 = vmatpush1.bf16.msra.mxu0 0
    %381 = vmatprep.subr.bf16.mxu0 0
    %382 = vmatpush1.bf16.msra.mxu0 0
    %383 = vmatprep.subr.bf16.mxu0 0
    %384 = vmatpush1.bf16.msra.mxu0 0
    %385 = vmatprep.subr.bf16.mxu0 0
    %386 = vmatpush1.bf16.msra.mxu0 0
    %387 = vmatprep.subr.bf16.mxu0 0
    %388 = vmatpush1.bf16.msra.mxu0 0
    %389 = vmatprep.subr.bf16.mxu0 0
    %390 = vmatpush1.bf16.msra.mxu0 0
    %391 = vmatprep.subr.bf16.mxu0 0
    %392 = vmatpush1.bf16.msra.mxu0 0
    %393 = vmatprep.subr.bf16.mxu0 0
    %394 = vmatpush1.bf16.msra.mxu0 0
    %395 = vmatprep.mubr.bf16.mxu0 0
    %396 = vmatmul.mubr.bf16.gmra.mrb[0].mxu0 %v288
    %v397 = vpop.f32.mrb[0].mxu0
    %v398 = vadd.f32 %v70, %v397
    %v399 = vpop.f32.mrb[0].mxu0
    %v400 = vpop.f32.mrb[0].mxu0
    %v401 = vpop.f32.mrb[0].mxu0
    %402 = vdwg.mxu0
    %v403 = vpack.c.bf16 %v360, %v360
    %v405 = vsel %vm195, %v403, 0
    %407 = vmatprep.subr.bf16.mxu0 %v169
    %408 = vmatpush1.bf16.msra.mxu0 %v168
    %409 = vmatprep.subr.bf16.mxu0 %v171
    %410 = vmatpush1.bf16.msra.mxu0 %v170
    %411 = vmatprep.subr.bf16.mxu0 %v173
    %412 = vmatpush1.bf16.msra.mxu0 %v172
    %413 = vmatprep.subr.bf16.mxu0 %v175
    %414 = vmatpush1.bf16.msra.mxu0 %v174
    %415 = vmatprep.subr.bf16.mxu0 0
    %416 = vmatpush1.bf16.msra.mxu0 0
    %417 = vmatprep.subr.bf16.mxu0 0
    %418 = vmatpush1.bf16.msra.mxu0 0
    %419 = vmatprep.subr.bf16.mxu0 0
    %420 = vmatpush1.bf16.msra.mxu0 0
    %421 = vmatprep.subr.bf16.mxu0 0
    %422 = vmatpush1.bf16.msra.mxu0 0
    %423 = vmatprep.subr.bf16.mxu0 0
    %424 = vmatpush1.bf16.msra.mxu0 0
    %425 = vmatprep.subr.bf16.mxu0 0
    %426 = vmatpush1.bf16.msra.mxu0 0
    %427 = vmatprep.subr.bf16.mxu0 0
    %428 = vmatpush1.bf16.msra.mxu0 0
    %429 = vmatprep.subr.bf16.mxu0 0
    %430 = vmatpush1.bf16.msra.mxu0 0
    %431 = vmatprep.subr.bf16.mxu0 0
    %432 = vmatpush1.bf16.msra.mxu0 0
    %433 = vmatprep.subr.bf16.mxu0 0
    %434 = vmatpush1.bf16.msra.mxu0 0
    %435 = vmatprep.subr.bf16.mxu0 0
    %436 = vmatpush1.bf16.msra.mxu0 0
    %437 = vmatprep.subr.bf16.mxu0 0
    %438 = vmatpush1.bf16.msra.mxu0 0
    %439 = vmatprep.mubr.bf16.mxu0 0
    %440 = vmatmul.mubr.bf16.gmra.mrb[0].mxu0 %v405
    %v441 = vpop.f32.mrb[0].mxu0
    %v442 = vadd.f32 %v188, %v441
    %v443 = vpop.f32.mrb[0].mxu0
    %v444 = vadd.f32 %v192, %v443
    %v445 = vpop.f32.mrb[0].mxu0
    %v446 = vpop.f32.mrb[0].mxu0
    %447 = vdwg.mxu0
    %v448 = vxor.u32 %v398, 2147483648
    %v449 = vmul.f32 %v448, 1.442695
    %v450 = vpow.pop %v449
    %v451 = vadd.f32 %v450, 1.0
    %v452 = vrcp.pop %v451
    %v453 = vmul.f32 1.0, %v452
    %v454 = vtanh.pop %v398
    %v455 = vmul.f32 %v453, %v256
    %457 = vrot.lane.b32.xlu0 %v454, 32
    %v458 = vpop.permute.xlu0 %457
    %v460 = vmul.f32 %v453, %v458
    %462 = vrot.lane.b32.xlu0 %v460, 32
    %v463 = vpop.permute.xlu0 %462
    %v465 = vadd.f32 %v455, %v463
    %v466 = vtanh.pop %v465
    %468 = vrot.lane.b32.xlu0 %v466, 32
    %v469 = vpop.permute.xlu0 %468
    %v471 = vmul.f32 %v453, %v469
    %v472 = vpack.c.bf16 %v471, %v471
    %474 = vrot.lane.b32.xlu0 %v472, 64
    %v475 = vpop.permute.xlu0 %474
    %v477 = vsel %vm100, %v475, 0
    %479 = vmatprep.subr.bf16.mxu0 %v280
    %480 = vmatpush1.bf16.msra.mxu0 %v279
    %481 = vmatprep.subr.bf16.mxu0 %v282
    %482 = vmatpush1.bf16.msra.mxu0 %v281
    %483 = vmatprep.subr.bf16.mxu0 0
    %484 = vmatpush1.bf16.msra.mxu0 0
    %485 = vmatprep.subr.bf16.mxu0 0
    %486 = vmatpush1.bf16.msra.mxu0 0
    %487 = vmatprep.subr.bf16.mxu0 0
    %488 = vmatpush1.bf16.msra.mxu0 0
    %489 = vmatprep.subr.bf16.mxu0 0
    %490 = vmatpush1.bf16.msra.mxu0 0
    %491 = vmatprep.subr.bf16.mxu0 0
    %492 = vmatpush1.bf16.msra.mxu0 0
    %493 = vmatprep.subr.bf16.mxu0 0
    %494 = vmatpush1.bf16.msra.mxu0 0
    %495 = vmatprep.subr.bf16.mxu0 0
    %496 = vmatpush1.bf16.msra.mxu0 0
    %497 = vmatprep.subr.bf16.mxu0 0
    %498 = vmatpush1.bf16.msra.mxu0 0
    %499 = vmatprep.subr.bf16.mxu0 0
    %500 = vmatpush1.bf16.msra.mxu0 0
    %501 = vmatprep.subr.bf16.mxu0 0
    %502 = vmatpush1.bf16.msra.mxu0 0
    %503 = vmatprep.subr.bf16.mxu0 0
    %504 = vmatpush1.bf16.msra.mxu0 0
    %505 = vmatprep.subr.bf16.mxu0 0
    %506 = vmatpush1.bf16.msra.mxu0 0
    %507 = vmatprep.subr.bf16.mxu0 0
    %508 = vmatpush1.bf16.msra.mxu0 0
    %509 = vmatprep.subr.bf16.mxu0 0
    %510 = vmatpush1.bf16.msra.mxu0 0
    %511 = vmatprep.mubr.bf16.mxu0 0
    %512 = vmatmul.mubr.bf16.gmra.mrb[0].mxu0 %v477
    %v513 = vpop.f32.mrb[0].mxu0
    %v514 = vadd.f32 %v442, %v513
    %v515 = vpop.f32.mrb[0].mxu0
    %v516 = vadd.f32 %v444, %v515
    %v517 = vpop.f32.mrb[0].mxu0
    %v518 = vpop.f32.mrb[0].mxu0
    %519 = vdwg.mxu0
    %v520 = vxor.u32 %v514, 2147483648
    %v521 = vxor.u32 %v516, 2147483648
    %v522 = vmul.f32 %v520, 1.442695
    %v523 = vpow.pop %v522
    %v524 = vmul.f32 %v521, 1.442695
    %v525 = vpow.pop %v524
    %v526 = vadd.f32 %v523, 1.0
    %v527 = vadd.f32 %v525, 1.0
    %v528 = vrcp.pop %v526
    %v529 = vmul.f32 1.0, %v528
    %v530 = vrcp.pop %v527
    %v531 = vmul.f32 1.0, %v530
    %v532 = vtanh.pop %v516
    %v533 = vmul.f32 %v529, %v354
    %535 = vrot.lane.b32.xlu0 %v532, 64
    %v536 = vpop.permute.xlu0 %535
    %v538 = vmul.f32 %v529, %v536
    %540 = vrot.lane.b32.xlu0 %v538, 64
    %v541 = vpop.permute.xlu0 %540
    %v543 = vadd.f32 %v533, %v541
    %v544 = vtanh.pop %v543
    %546 = vrot.lane.b32.xlu0 %v544, 64
    %v547 = vpop.permute.xlu0 %546
    %v549 = vmul.f32 %v531, %v547
    %550 = vst.msk [vmem:[#allocation2 + $0x1] sm:$0x1] %vm361, %v549
    %551 = vmatprep.subr.bf16.mxu0 0
    %552 = vmatpush1.bf16.msra.mxu0 %v96
    %553 = vmatprep.subr.bf16.mxu0 0
    %554 = vmatpush1.bf16.msra.mxu0 %v97
    %555 = vmatprep.subr.bf16.mxu0 0
    %556 = vmatpush1.bf16.msra.mxu0 0
    %557 = vmatprep.subr.bf16.mxu0 0
    %558 = vmatpush1.bf16.msra.mxu0 0
    %559 = vmatprep.subr.bf16.mxu0 0
    %560 = vmatpush1.bf16.msra.mxu0 0
    %561 = vmatprep.subr.bf16.mxu0 0
    %562 = vmatpush1.bf16.msra.mxu0 0
    %563 = vmatprep.subr.bf16.mxu0 0
    %564 = vmatpush1.bf16.msra.mxu0 0
    %565 = vmatprep.subr.bf16.mxu0 0
    %566 = vmatpush1.bf16.msra.mxu0 0
    %567 = vmatprep.subr.bf16.mxu0 0
    %568 = vmatpush1.bf16.msra.mxu0 0
    %569 = vmatprep.subr.bf16.mxu0 0
    %570 = vmatpush1.bf16.msra.mxu0 0
    %571 = vmatprep.subr.bf16.mxu0 0
    %572 = vmatpush1.bf16.msra.mxu0 0
    %573 = vmatprep.subr.bf16.mxu0 0
    %574 = vmatpush1.bf16.msra.mxu0 0
    %575 = vmatprep.subr.bf16.mxu0 0
    %576 = vmatpush1.bf16.msra.mxu0 0
    %577 = vmatprep.subr.bf16.mxu0 0
    %578 = vmatpush1.bf16.msra.mxu0 0
    %579 = vmatprep.subr.bf16.mxu0 0
    %580 = vmatpush1.bf16.msra.mxu0 0
    %581 = vmatprep.subr.bf16.mxu0 0
    %582 = vmatpush1.bf16.msra.mxu0 0
    %583 = vmatprep.mubr.bf16.mxu0 0
    %584 = vmatmul.mubr.bf16.gmra.mrb[0].mxu0 %v477
    %v585 = vpop.f32.mrb[0].mxu0
    %v586 = vadd.f32 %v70, %v585
    %v587 = vpop.f32.mrb[0].mxu0
    %v588 = vpop.f32.mrb[0].mxu0
    %v589 = vpop.f32.mrb[0].mxu0
    %590 = vdwg.mxu0
    %v591 = vpack.c.bf16 %v549, %v549
    %v593 = vsel %vm195, %v591, 0
    %595 = vmatprep.subr.bf16.mxu0 %v169
    %596 = vmatpush1.bf16.msra.mxu0 %v168
    %597 = vmatprep.subr.bf16.mxu0 %v171
    %598 = vmatpush1.bf16.msra.mxu0 %v170
    %599 = vmatprep.subr.bf16.mxu0 %v173
    %600 = vmatpush1.bf16.msra.mxu0 %v172
    %601 = vmatprep.subr.bf16.mxu0 %v175
    %602 = vmatpush1.bf16.msra.mxu0 %v174
    %603 = vmatprep.subr.bf16.mxu0 0
    %604 = vmatpush1.bf16.msra.mxu0 0
    %605 = vmatprep.subr.bf16.mxu0 0
    %606 = vmatpush1.bf16.msra.mxu0 0
    %607 = vmatprep.subr.bf16.mxu0 0
    %608 = vmatpush1.bf16.msra.mxu0 0
    %609 = vmatprep.subr.bf16.mxu0 0
    %610 = vmatpush1.bf16.msra.mxu0 0
    %611 = vmatprep.subr.bf16.mxu0 0
    %612 = vmatpush1.bf16.msra.mxu0 0
    %613 = vmatprep.subr.bf16.mxu0 0
    %614 = vmatpush1.bf16.msra.mxu0 0
    %615 = vmatprep.subr.bf16.mxu0 0
    %616 = vmatpush1.bf16.msra.mxu0 0
    %617 = vmatprep.subr.bf16.mxu0 0
    %618 = vmatpush1.bf16.msra.mxu0 0
    %619 = vmatprep.subr.bf16.mxu0 0
    %620 = vmatpush1.bf16.msra.mxu0 0
    %621 = vmatprep.subr.bf16.mxu0 0
    %622 = vmatpush1.bf16.msra.mxu0 0
    %623 = vmatprep.subr.bf16.mxu0 0
    %624 = vmatpush1.bf16.msra.mxu0 0
    %625 = vmatprep.subr.bf16.mxu0 0
    %626 = vmatpush1.bf16.msra.mxu0 0
    %627 = vmatprep.mubr.bf16.mxu0 0
    %628 = vmatmul.mubr.bf16.gmra.mrb[0].mxu0 %v593
    %v629 = vpop.f32.mrb[0].mxu0
    %v630 = vadd.f32 %v188, %v629
    %v631 = vpop.f32.mrb[0].mxu0
    %v632 = vadd.f32 %v192, %v631
    %v633 = vpop.f32.mrb[0].mxu0
    %v634 = vpop.f32.mrb[0].mxu0
    %635 = vdwg.mxu0
    %v636 = vxor.u32 %v586, 2147483648
    %v637 = vmul.f32 %v636, 1.442695
    %v638 = vpow.pop %v637
    %v639 = vadd.f32 %v638, 1.0
    %v640 = vrcp.pop %v639
    %v641 = vmul.f32 1.0, %v640
    %v642 = vtanh.pop %v586
    %v643 = vmul.f32 %v641, %v465
    %645 = vrot.lane.b32.xlu0 %v642, 32
    %v646 = vpop.permute.xlu0 %645
    %v648 = vmul.f32 %v641, %v646
    %650 = vrot.lane.b32.xlu0 %v648, 32
    %v651 = vpop.permute.xlu0 %650
    %v653 = vadd.f32 %v643, %v651
    %v654 = vtanh.pop %v653
    %656 = vrot.lane.b32.xlu0 %v654, 32
    %v657 = vpop.permute.xlu0 %656
    %v659 = vmul.f32 %v641, %v657
    %v660 = vpack.c.bf16 %v659, %v659
    %662 = vrot.lane.b32.xlu0 %v660, 64
    %v663 = vpop.permute.xlu0 %662
    %v665 = vsel %vm100, %v663, 0
    %667 = vmatprep.subr.bf16.mxu0 %v280
    %668 = vmatpush1.bf16.msra.mxu0 %v279
    %669 = vmatprep.subr.bf16.mxu0 %v282
    %670 = vmatpush1.bf16.msra.mxu0 %v281
    %671 = vmatprep.subr.bf16.mxu0 0
    %672 = vmatpush1.bf16.msra.mxu0 0
    %673 = vmatprep.subr.bf16.mxu0 0
    %674 = vmatpush1.bf16.msra.mxu0 0
    %675 = vmatprep.subr.bf16.mxu0 0
    %676 = vmatpush1.bf16.msra.mxu0 0
    %677 = vmatprep.subr.bf16.mxu0 0
    %678 = vmatpush1.bf16.msra.mxu0 0
    %679 = vmatprep.subr.bf16.mxu0 0
    %680 = vmatpush1.bf16.msra.mxu0 0
    %681 = vmatprep.subr.bf16.mxu0 0
    %682 = vmatpush1.bf16.msra.mxu0 0
    %683 = vmatprep.subr.bf16.mxu0 0
    %684 = vmatpush1.bf16.msra.mxu0 0
    %685 = vmatprep.subr.bf16.mxu0 0
    %686 = vmatpush1.bf16.msra.mxu0 0
    %687 = vmatprep.subr.bf16.mxu0 0
    %688 = vmatpush1.bf16.msra.mxu0 0
    %689 = vmatprep.subr.bf16.mxu0 0
    %690 = vmatpush1.bf16.msra.mxu0 0
    %691 = vmatprep.subr.bf16.mxu0 0
    %692 = vmatpush1.bf16.msra.mxu0 0
    %693 = vmatprep.subr.bf16.mxu0 0
    %694 = vmatpush1.bf16.msra.mxu0 0
    %695 = vmatprep.subr.bf16.mxu0 0
    %696 = vmatpush1.bf16.msra.mxu0 0
    %697 = vmatprep.subr.bf16.mxu0 0
    %698 = vmatpush1.bf16.msra.mxu0 0
    %699 = vmatprep.mubr.bf16.mxu0 0
    %700 = vmatmul.mubr.bf16.gmra.mrb[0].mxu0 %v665
    %v701 = vpop.f32.mrb[0].mxu0
    %v702 = vadd.f32 %v630, %v701
    %v703 = vpop.f32.mrb[0].mxu0
    %v704 = vadd.f32 %v632, %v703
    %v705 = vpop.f32.mrb[0].mxu0
    %v706 = vpop.f32.mrb[0].mxu0
    %707 = vdwg.mxu0
    %v708 = vxor.u32 %v702, 2147483648
    %v709 = vxor.u32 %v704, 2147483648
    %v710 = vmul.f32 %v708, 1.442695
    %v711 = vpow.pop %v710
    %v712 = vmul.f32 %v709, 1.442695
    %v713 = vpow.pop %v712
    %v714 = vadd.f32 %v711, 1.0
    %v715 = vadd.f32 %v713, 1.0
    %v716 = vrcp.pop %v714
    %v717 = vmul.f32 1.0, %v716
    %v718 = vrcp.pop %v715
    %v719 = vmul.f32 1.0, %v718
    %v720 = vtanh.pop %v704
    %v721 = vmul.f32 %v717, %v543
    %723 = vrot.lane.b32.xlu0 %v720, 64
    %v724 = vpop.permute.xlu0 %723
    %v726 = vmul.f32 %v717, %v724
    %728 = vrot.lane.b32.xlu0 %v726, 64
    %v729 = vpop.permute.xlu0 %728
    %v731 = vadd.f32 %v721, %v729
    %v732 = vtanh.pop %v731
    %734 = vrot.lane.b32.xlu0 %v732, 64
    %v735 = vpop.permute.xlu0 %734
    %v737 = vmul.f32 %v719, %v735
    %738 = vst.msk [vmem:[#allocation2 + $0x2] sm:$0x1] %vm361, %v737
    %739 = vmatprep.subr.bf16.mxu0 0
    %740 = vmatpush1.bf16.msra.mxu0 %v96
    %741 = vmatprep.subr.bf16.mxu0 0
    %742 = vmatpush1.bf16.msra.mxu0 %v97
    %743 = vmatprep.subr.bf16.mxu0 0
    %744 = vmatpush1.bf16.msra.mxu0 0
    %745 = vmatprep.subr.bf16.mxu0 0
    %746 = vmatpush1.bf16.msra.mxu0 0
    %747 = vmatprep.subr.bf16.mxu0 0
    %748 = vmatpush1.bf16.msra.mxu0 0
    %749 = vmatprep.subr.bf16.mxu0 0
    %750 = vmatpush1.bf16.msra.mxu0 0
    %751 = vmatprep.subr.bf16.mxu0 0
    %752 = vmatpush1.bf16.msra.mxu0 0
    %753 = vmatprep.subr.bf16.mxu0 0
    %754 = vmatpush1.bf16.msra.mxu0 0
    %755 = vmatprep.subr.bf16.mxu0 0
    %756 = vmatpush1.bf16.msra.mxu0 0
    %757 = vmatprep.subr.bf16.mxu0 0
    %758 = vmatpush1.bf16.msra.mxu0 0
    %759 = vmatprep.subr.bf16.mxu0 0
    %760 = vmatpush1.bf16.msra.mxu0 0
    %761 = vmatprep.subr.bf16.mxu0 0
    %762 = vmatpush1.bf16.msra.mxu0 0
    %763 = vmatprep.subr.bf16.mxu0 0
    %764 = vmatpush1.bf16.msra.mxu0 0
    %765 = vmatprep.subr.bf16.mxu0 0
    %766 = vmatpush1.bf16.msra.mxu0 0
    %767 = vmatprep.subr.bf16.mxu0 0
    %768 = vmatpush1.bf16.msra.mxu0 0
    %769 = vmatprep.subr.bf16.mxu0 0
    %770 = vmatpush1.bf16.msra.mxu0 0
    %771 = vmatprep.mubr.bf16.mxu0 0
    %772 = vmatmul.mubr.bf16.gmra.mrb[0].mxu0 %v665
    %v773 = vpop.f32.mrb[0].mxu0
    %v774 = vadd.f32 %v70, %v773
    %v775 = vpop.f32.mrb[0].mxu0
    %v776 = vpop.f32.mrb[0].mxu0
    %v777 = vpop.f32.mrb[0].mxu0
    %778 = vdwg.mxu0
    %v779 = vpack.c.bf16 %v737, %v737
    %v781 = vsel %vm195, %v779, 0
    %783 = vmatprep.subr.bf16.mxu0 %v169
    %784 = vmatpush1.bf16.msra.mxu0 %v168
    %785 = vmatprep.subr.bf16.mxu0 %v171
    %786 = vmatpush1.bf16.msra.mxu0 %v170
    %787 = vmatprep.subr.bf16.mxu0 %v173
    %788 = vmatpush1.bf16.msra.mxu0 %v172
    %789 = vmatprep.subr.bf16.mxu0 %v175
    %790 = vmatpush1.bf16.msra.mxu0 %v174
    %791 = vmatprep.subr.bf16.mxu0 0
    %792 = vmatpush1.bf16.msra.mxu0 0
    %793 = vmatprep.subr.bf16.mxu0 0
    %794 = vmatpush1.bf16.msra.mxu0 0
    %795 = vmatprep.subr.bf16.mxu0 0
    %796 = vmatpush1.bf16.msra.mxu0 0
    %797 = vmatprep.subr.bf16.mxu0 0
    %798 = vmatpush1.bf16.msra.mxu0 0
    %799 = vmatprep.subr.bf16.mxu0 0
    %800 = vmatpush1.bf16.msra.mxu0 0
    %801 = vmatprep.subr.bf16.mxu0 0
    %802 = vmatpush1.bf16.msra.mxu0 0
    %803 = vmatprep.subr.bf16.mxu0 0
    %804 = vmatpush1.bf16.msra.mxu0 0
    %805 = vmatprep.subr.bf16.mxu0 0
    %806 = vmatpush1.bf16.msra.mxu0 0
    %807 = vmatprep.subr.bf16.mxu0 0
    %808 = vmatpush1.bf16.msra.mxu0 0
    %809 = vmatprep.subr.bf16.mxu0 0
    %810 = vmatpush1.bf16.msra.mxu0 0
    %811 = vmatprep.subr.bf16.mxu0 0
    %812 = vmatpush1.bf16.msra.mxu0 0
    %813 = vmatprep.subr.bf16.mxu0 0
    %814 = vmatpush1.bf16.msra.mxu0 0
    %815 = vmatprep.mubr.bf16.mxu0 0
    %816 = vmatmul.mubr.bf16.gmra.mrb[0].mxu0 %v781
    %v817 = vpop.f32.mrb[0].mxu0
    %v818 = vadd.f32 %v188, %v817
    %v819 = vpop.f32.mrb[0].mxu0
    %v820 = vadd.f32 %v192, %v819
    %v821 = vpop.f32.mrb[0].mxu0
    %v822 = vpop.f32.mrb[0].mxu0
    %823 = vdwg.mxu0
    %v824 = vxor.u32 %v774, 2147483648
    %v825 = vmul.f32 %v824, 1.442695
    %v826 = vpow.pop %v825
    %v827 = vadd.f32 %v826, 1.0
    %v828 = vrcp.pop %v827
    %v829 = vmul.f32 1.0, %v828
    %v830 = vtanh.pop %v774
    %v831 = vmul.f32 %v829, %v653
    %833 = vrot.lane.b32.xlu0 %v830, 32
    %v834 = vpop.permute.xlu0 %833
    %v836 = vmul.f32 %v829, %v834
    %838 = vrot.lane.b32.xlu0 %v836, 32
    %v839 = vpop.permute.xlu0 %838
    %v841 = vadd.f32 %v831, %v839
    %v842 = vtanh.pop %v841
    %844 = vrot.lane.b32.xlu0 %v842, 32
    %v845 = vpop.permute.xlu0 %844
    %v847 = vmul.f32 %v829, %v845
    %v848 = vpack.c.bf16 %v847, %v847
    %850 = vrot.lane.b32.xlu0 %v848, 64
    %v851 = vpop.permute.xlu0 %850
    %v853 = vsel %vm100, %v851, 0
    %855 = vmatprep.subr.bf16.mxu0 %v280
    %856 = vmatpush1.bf16.msra.mxu0 %v279
    %857 = vmatprep.subr.bf16.mxu0 %v282
    %858 = vmatpush1.bf16.msra.mxu0 %v281
    %859 = vmatprep.subr.bf16.mxu0 0
    %860 = vmatpush1.bf16.msra.mxu0 0
    %861 = vmatprep.subr.bf16.mxu0 0
    %862 = vmatpush1.bf16.msra.mxu0 0
    %863 = vmatprep.subr.bf16.mxu0 0
    %864 = vmatpush1.bf16.msra.mxu0 0
    %865 = vmatprep.subr.bf16.mxu0 0
    %866 = vmatpush1.bf16.msra.mxu0 0
    %867 = vmatprep.subr.bf16.mxu0 0
    %868 = vmatpush1.bf16.msra.mxu0 0
    %869 = vmatprep.subr.bf16.mxu0 0
    %870 = vmatpush1.bf16.msra.mxu0 0
    %871 = vmatprep.subr.bf16.mxu0 0
    %872 = vmatpush1.bf16.msra.mxu0 0
    %873 = vmatprep.subr.bf16.mxu0 0
    %874 = vmatpush1.bf16.msra.mxu0 0
    %875 = vmatprep.subr.bf16.mxu0 0
    %876 = vmatpush1.bf16.msra.mxu0 0
    %877 = vmatprep.subr.bf16.mxu0 0
    %878 = vmatpush1.bf16.msra.mxu0 0
    %879 = vmatprep.subr.bf16.mxu0 0
    %880 = vmatpush1.bf16.msra.mxu0 0
    %881 = vmatprep.subr.bf16.mxu0 0
    %882 = vmatpush1.bf16.msra.mxu0 0
    %883 = vmatprep.subr.bf16.mxu0 0
    %884 = vmatpush1.bf16.msra.mxu0 0
    %885 = vmatprep.subr.bf16.mxu0 0
    %886 = vmatpush1.bf16.msra.mxu0 0
    %887 = vmatprep.mubr.bf16.mxu0 0
    %888 = vmatmul.mubr.bf16.gmra.mrb[0].mxu0 %v853
    %v889 = vpop.f32.mrb[0].mxu0
    %v890 = vadd.f32 %v818, %v889
    %v891 = vpop.f32.mrb[0].mxu0
    %v892 = vadd.f32 %v820, %v891
    %v893 = vpop.f32.mrb[0].mxu0
    %v894 = vpop.f32.mrb[0].mxu0
    %895 = vdwg.mxu0
    %v896 = vxor.u32 %v890, 2147483648
    %v897 = vxor.u32 %v892, 2147483648
    %v898 = vmul.f32 %v896, 1.442695
    %v899 = vpow.pop %v898
    %v900 = vmul.f32 %v897, 1.442695
    %v901 = vpow.pop %v900
    %v902 = vadd.f32 %v899, 1.0
    %v903 = vadd.f32 %v901, 1.0
    %v904 = vrcp.pop %v902
    %v905 = vmul.f32 1.0, %v904
    %v906 = vrcp.pop %v903
    %v907 = vmul.f32 1.0, %v906
    %v908 = vtanh.pop %v892
    %v909 = vmul.f32 %v905, %v731
    %911 = vrot.lane.b32.xlu0 %v908, 64
    %v912 = vpop.permute.xlu0 %911
    %v914 = vmul.f32 %v905, %v912
    %916 = vrot.lane.b32.xlu0 %v914, 64
    %v917 = vpop.permute.xlu0 %916
    %v919 = vadd.f32 %v909, %v917
    %v920 = vtanh.pop %v919
    %922 = vrot.lane.b32.xlu0 %v920, 64
    %v923 = vpop.permute.xlu0 %922
    %v925 = vmul.f32 %v907, %v923
    %926 = vst.msk [vmem:[#allocation2 + $0x3] sm:$0x1] %vm361, %v925
    %927 = vmatprep.subr.bf16.mxu0 0
    %928 = vmatpush1.bf16.msra.mxu0 %v96
    %929 = vmatprep.subr.bf16.mxu0 0
    %930 = vmatpush1.bf16.msra.mxu0 %v97
    %931 = vmatprep.subr.bf16.mxu0 0
    %932 = vmatpush1.bf16.msra.mxu0 0
    %933 = vmatprep.subr.bf16.mxu0 0
    %934 = vmatpush1.bf16.msra.mxu0 0
    %935 = vmatprep.subr.bf16.mxu0 0
    %936 = vmatpush1.bf16.msra.mxu0 0
    %937 = vmatprep.subr.bf16.mxu0 0
    %938 = vmatpush1.bf16.msra.mxu0 0
    %939 = vmatprep.subr.bf16.mxu0 0
    %940 = vmatpush1.bf16.msra.mxu0 0
    %941 = vmatprep.subr.bf16.mxu0 0
    %942 = vmatpush1.bf16.msra.mxu0 0
    %943 = vmatprep.subr.bf16.mxu0 0
    %944 = vmatpush1.bf16.msra.mxu0 0
    %945 = vmatprep.subr.bf16.mxu0 0
    %946 = vmatpush1.bf16.msra.mxu0 0
    %947 = vmatprep.subr.bf16.mxu0 0
    %948 = vmatpush1.bf16.msra.mxu0 0
    %949 = vmatprep.subr.bf16.mxu0 0
    %950 = vmatpush1.bf16.msra.mxu0 0
    %951 = vmatprep.subr.bf16.mxu0 0
    %952 = vmatpush1.bf16.msra.mxu0 0
    %953 = vmatprep.subr.bf16.mxu0 0
    %954 = vmatpush1.bf16.msra.mxu0 0
    %955 = vmatprep.subr.bf16.mxu0 0
    %956 = vmatpush1.bf16.msra.mxu0 0
    %957 = vmatprep.subr.bf16.mxu0 0
    %958 = vmatpush1.bf16.msra.mxu0 0
    %959 = vmatprep.mubr.bf16.mxu0 0
    %960 = vmatmul.mubr.bf16.gmra.mrb[0].mxu0 %v853
    %v961 = vpop.f32.mrb[0].mxu0
    %v962 = vadd.f32 %v70, %v961
    %v963 = vpop.f32.mrb[0].mxu0
    %v964 = vpop.f32.mrb[0].mxu0
    %v965 = vpop.f32.mrb[0].mxu0
    %966 = vdwg.mxu0
    %v967 = vpack.c.bf16 %v925, %v925
    %v969 = vsel %vm195, %v967, 0
    %971 = vmatprep.subr.bf16.mxu0 %v169
    %972 = vmatpush1.bf16.msra.mxu0 %v168
    %973 = vmatprep.subr.bf16.mxu0 %v171
    %974 = vmatpush1.bf16.msra.mxu0 %v170
    %975 = vmatprep.subr.bf16.mxu0 %v173
    %976 = vmatpush1.bf16.msra.mxu0 %v172
    %977 = vmatprep.subr.bf16.mxu0 %v175
    %978 = vmatpush1.bf16.msra.mxu0 %v174
    %979 = vmatprep.subr.bf16.mxu0 0
    %980 = vmatpush1.bf16.msra.mxu0 0
    %981 = vmatprep.subr.bf16.mxu0 0
    %982 = vmatpush1.bf16.msra.mxu0 0
    %983 = vmatprep.subr.bf16.mxu0 0
    %984 = vmatpush1.bf16.msra.mxu0 0
    %985 = vmatprep.subr.bf16.mxu0 0
    %986 = vmatpush1.bf16.msra.mxu0 0
    %987 = vmatprep.subr.bf16.mxu0 0
    %988 = vmatpush1.bf16.msra.mxu0 0
    %989 = vmatprep.subr.bf16.mxu0 0
    %990 = vmatpush1.bf16.msra.mxu0 0
    %991 = vmatprep.subr.bf16.mxu0 0
    %992 = vmatpush1.bf16.msra.mxu0 0
    %993 = vmatprep.subr.bf16.mxu0 0
    %994 = vmatpush1.bf16.msra.mxu0 0
    %995 = vmatprep.subr.bf16.mxu0 0
    %996 = vmatpush1.bf16.msra.mxu0 0
    %997 = vmatprep.subr.bf16.mxu0 0
    %998 = vmatpush1.bf16.msra.mxu0 0
    %999 = vmatprep.subr.bf16.mxu0 0
    %1000 = vmatpush1.bf16.msra.mxu0 0
    %1001 = vmatprep.subr.bf16.mxu0 0
    %1002 = vmatpush1.bf16.msra.mxu0 0
    %1003 = vmatprep.mubr.bf16.mxu0 0
    %1004 = vmatmul.mubr.bf16.gmra.mrb[0].mxu0 %v969
    %v1005 = vpop.f32.mrb[0].mxu0
    %v1006 = vadd.f32 %v188, %v1005
    %v1007 = vpop.f32.mrb[0].mxu0
    %v1008 = vadd.f32 %v192, %v1007
    %v1009 = vpop.f32.mrb[0].mxu0
    %v1010 = vpop.f32.mrb[0].mxu0
    %1011 = vdwg.mxu0
    %v1012 = vxor.u32 %v962, 2147483648
    %v1013 = vmul.f32 %v1012, 1.442695
    %v1014 = vpow.pop %v1013
    %v1015 = vadd.f32 %v1014, 1.0
    %v1016 = vrcp.pop %v1015
    %v1017 = vmul.f32 1.0, %v1016
    %v1018 = vtanh.pop %v962
    %v1019 = vmul.f32 %v1017, %v841
    %1021 = vrot.lane.b32.xlu0 %v1018, 32
    %v1022 = vpop.permute.xlu0 %1021
    %v1024 = vmul.f32 %v1017, %v1022
    %1026 = vrot.lane.b32.xlu0 %v1024, 32
    %v1027 = vpop.permute.xlu0 %1026
    %v1029 = vadd.f32 %v1019, %v1027
    %v1030 = vtanh.pop %v1029
    %1032 = vrot.lane.b32.xlu0 %v1030, 32
    %v1033 = vpop.permute.xlu0 %1032
    %v1035 = vmul.f32 %v1017, %v1033
    %v1036 = vpack.c.bf16 %v1035, %v1035
    %1038 = vrot.lane.b32.xlu0 %v1036, 64
    %v1039 = vpop.permute.xlu0 %1038
    %v1041 = vsel %vm100, %v1039, 0
    %1043 = vmatprep.subr.bf16.mxu0 %v280
    %1044 = vmatpush1.bf16.msra.mxu0 %v279
    %1045 = vmatprep.subr.bf16.mxu0 %v282
    %1046 = vmatpush1.bf16.msra.mxu0 %v281
    %1047 = vmatprep.subr.bf16.mxu0 0
    %1048 = vmatpush1.bf16.msra.mxu0 0
    %1049 = vmatprep.subr.bf16.mxu0 0
    %1050 = vmatpush1.bf16.msra.mxu0 0
    %1051 = vmatprep.subr.bf16.mxu0 0
    %1052 = vmatpush1.bf16.msra.mxu0 0
    %1053 = vmatprep.subr.bf16.mxu0 0
    %1054 = vmatpush1.bf16.msra.mxu0 0
    %1055 = vmatprep.subr.bf16.mxu0 0
    %1056 = vmatpush1.bf16.msra.mxu0 0
    %1057 = vmatprep.subr.bf16.mxu0 0
    %1058 = vmatpush1.bf16.msra.mxu0 0
    %1059 = vmatprep.subr.bf16.mxu0 0
    %1060 = vmatpush1.bf16.msra.mxu0 0
    %1061 = vmatprep.subr.bf16.mxu0 0
    %1062 = vmatpush1.bf16.msra.mxu0 0
    %1063 = vmatprep.subr.bf16.mxu0 0
    %1064 = vmatpush1.bf16.msra.mxu0 0
    %1065 = vmatprep.subr.bf16.mxu0 0
    %1066 = vmatpush1.bf16.msra.mxu0 0
    %1067 = vmatprep.subr.bf16.mxu0 0
    %1068 = vmatpush1.bf16.msra.mxu0 0
    %1069 = vmatprep.subr.bf16.mxu0 0
    %1070 = vmatpush1.bf16.msra.mxu0 0
    %1071 = vmatprep.subr.bf16.mxu0 0
    %1072 = vmatpush1.bf16.msra.mxu0 0
    %1073 = vmatprep.subr.bf16.mxu0 0
    %1074 = vmatpush1.bf16.msra.mxu0 0
    %1075 = vmatprep.mubr.bf16.mxu0 0
    %1076 = vmatmul.mubr.bf16.gmra.mrb[0].mxu0 %v1041
    %v1077 = vpop.f32.mrb[0].mxu0
    %v1078 = vadd.f32 %v1006, %v1077
    %v1079 = vpop.f32.mrb[0].mxu0
    %v1080 = vadd.f32 %v1008, %v1079
    %v1081 = vpop.f32.mrb[0].mxu0
    %v1082 = vpop.f32.mrb[0].mxu0
    %1083 = vdwg.mxu0
    %v1084 = vxor.u32 %v1078, 2147483648
    %v1085 = vxor.u32 %v1080, 2147483648
    %v1086 = vmul.f32 %v1084, 1.442695
    %v1087 = vpow.pop %v1086
    %v1088 = vmul.f32 %v1085, 1.442695
    %v1089 = vpow.pop %v1088
    %v1090 = vadd.f32 %v1087, 1.0
    %v1091 = vadd.f32 %v1089, 1.0
    %v1092 = vrcp.pop %v1090
    %v1093 = vmul.f32 1.0, %v1092
    %v1094 = vrcp.pop %v1091
    %v1095 = vmul.f32 1.0, %v1094
    %v1096 = vtanh.pop %v1080
    %v1097 = vmul.f32 %v1093, %v919
    %1099 = vrot.lane.b32.xlu0 %v1096, 64
    %v1100 = vpop.permute.xlu0 %1099
    %v1102 = vmul.f32 %v1093, %v1100
    %1104 = vrot.lane.b32.xlu0 %v1102, 64
    %v1105 = vpop.permute.xlu0 %1104
    %v1107 = vadd.f32 %v1097, %v1105
    %v1108 = vtanh.pop %v1107
    %1110 = vrot.lane.b32.xlu0 %v1108, 64
    %v1111 = vpop.permute.xlu0 %1110
    %v1113 = vmul.f32 %v1095, %v1111
    %1114 = vst.msk [vmem:[#allocation2 + $0x4] sm:$0x1] %vm361, %v1113
    %1115 = vmatprep.subr.bf16.mxu0 0
    %1116 = vmatpush1.bf16.msra.mxu0 %v96
    %1117 = vmatprep.subr.bf16.mxu0 0
    %1118 = vmatpush1.bf16.msra.mxu0 %v97
    %1119 = vmatprep.subr.bf16.mxu0 0
    %1120 = vmatpush1.bf16.msra.mxu0 0
    %1121 = vmatprep.subr.bf16.mxu0 0
    %1122 = vmatpush1.bf16.msra.mxu0 0
    %1123 = vmatprep.subr.bf16.mxu0 0
    %1124 = vmatpush1.bf16.msra.mxu0 0
    %1125 = vmatprep.subr.bf16.mxu0 0
    %1126 = vmatpush1.bf16.msra.mxu0 0
    %1127 = vmatprep.subr.bf16.mxu0 0
    %1128 = vmatpush1.bf16.msra.mxu0 0
    %1129 = vmatprep.subr.bf16.mxu0 0
    %1130 = vmatpush1.bf16.msra.mxu0 0
    %1131 = vmatprep.subr.bf16.mxu0 0
    %1132 = vmatpush1.bf16.msra.mxu0 0
    %1133 = vmatprep.subr.bf16.mxu0 0
    %1134 = vmatpush1.bf16.msra.mxu0 0
    %1135 = vmatprep.subr.bf16.mxu0 0
    %1136 = vmatpush1.bf16.msra.mxu0 0
    %1137 = vmatprep.subr.bf16.mxu0 0
    %1138 = vmatpush1.bf16.msra.mxu0 0
    %1139 = vmatprep.subr.bf16.mxu0 0
    %1140 = vmatpush1.bf16.msra.mxu0 0
    %1141 = vmatprep.subr.bf16.mxu0 0
    %1142 = vmatpush1.bf16.msra.mxu0 0
    %1143 = vmatprep.subr.bf16.mxu0 0
    %1144 = vmatpush1.bf16.msra.mxu0 0
    %1145 = vmatprep.subr.bf16.mxu0 0
    %1146 = vmatpush1.bf16.msra.mxu0 0
    %1147 = vmatprep.mubr.bf16.mxu0 0
    %1148 = vmatmul.mubr.bf16.gmra.mrb[0].mxu0 %v1041
    %v1149 = vpop.f32.mrb[0].mxu0
    %v1150 = vadd.f32 %v70, %v1149
    %v1151 = vpop.f32.mrb[0].mxu0
    %v1152 = vpop.f32.mrb[0].mxu0
    %v1153 = vpop.f32.mrb[0].mxu0
    %1154 = vdwg.mxu0
    %v1155 = vpack.c.bf16 %v1113, %v1113
    %v1157 = vsel %vm195, %v1155, 0
    %1159 = vmatprep.subr.bf16.mxu0 %v169
    %1160 = vmatpush1.bf16.msra.mxu0 %v168
    %1161 = vmatprep.subr.bf16.mxu0 %v171
    %1162 = vmatpush1.bf16.msra.mxu0 %v170
    %1163 = vmatprep.subr.bf16.mxu0 %v173
    %1164 = vmatpush1.bf16.msra.mxu0 %v172
    %1165 = vmatprep.subr.bf16.mxu0 %v175
    %1166 = vmatpush1.bf16.msra.mxu0 %v174
    %1167 = vmatprep.subr.bf16.mxu0 0
    %1168 = vmatpush1.bf16.msra.mxu0 0
    %1169 = vmatprep.subr.bf16.mxu0 0
    %1170 = vmatpush1.bf16.msra.mxu0 0
    %1171 = vmatprep.subr.bf16.mxu0 0
    %1172 = vmatpush1.bf16.msra.mxu0 0
    %1173 = vmatprep.subr.bf16.mxu0 0
    %1174 = vmatpush1.bf16.msra.mxu0 0
    %1175 = vmatprep.subr.bf16.mxu0 0
    %1176 = vmatpush1.bf16.msra.mxu0 0
    %1177 = vmatprep.subr.bf16.mxu0 0
    %1178 = vmatpush1.bf16.msra.mxu0 0
    %1179 = vmatprep.subr.bf16.mxu0 0
    %1180 = vmatpush1.bf16.msra.mxu0 0
    %1181 = vmatprep.subr.bf16.mxu0 0
    %1182 = vmatpush1.bf16.msra.mxu0 0
    %1183 = vmatprep.subr.bf16.mxu0 0
    %1184 = vmatpush1.bf16.msra.mxu0 0
    %1185 = vmatprep.subr.bf16.mxu0 0
    %1186 = vmatpush1.bf16.msra.mxu0 0
    %1187 = vmatprep.subr.bf16.mxu0 0
    %1188 = vmatpush1.bf16.msra.mxu0 0
    %1189 = vmatprep.subr.bf16.mxu0 0
    %1190 = vmatpush1.bf16.msra.mxu0 0
    %1191 = vmatprep.mubr.bf16.mxu0 0
    %1192 = vmatmul.mubr.bf16.gmra.mrb[0].mxu0 %v1157
    %v1193 = vpop.f32.mrb[0].mxu0
    %v1194 = vadd.f32 %v188, %v1193
    %v1195 = vpop.f32.mrb[0].mxu0
    %v1196 = vadd.f32 %v192, %v1195
    %v1197 = vpop.f32.mrb[0].mxu0
    %v1198 = vpop.f32.mrb[0].mxu0
    %1199 = vdwg.mxu0
    %v1200 = vxor.u32 %v1150, 2147483648
    %v1201 = vmul.f32 %v1200, 1.442695
    %v1202 = vpow.pop %v1201
    %v1203 = vadd.f32 %v1202, 1.0
    %v1204 = vrcp.pop %v1203
    %v1205 = vmul.f32 1.0, %v1204
    %v1206 = vtanh.pop %v1150
    %v1207 = vmul.f32 %v1205, %v1029
    %1209 = vrot.lane.b32.xlu0 %v1206, 32
    %v1210 = vpop.permute.xlu0 %1209
    %v1212 = vmul.f32 %v1205, %v1210
    %1214 = vrot.lane.b32.xlu0 %v1212, 32
    %v1215 = vpop.permute.xlu0 %1214
    %v1217 = vadd.f32 %v1207, %v1215
    %v1218 = vtanh.pop %v1217
    %1220 = vrot.lane.b32.xlu0 %v1218, 32
    %v1221 = vpop.permute.xlu0 %1220
    %v1223 = vmul.f32 %v1205, %v1221
    %v1224 = vpack.c.bf16 %v1223, %v1223
    %1226 = vrot.lane.b32.xlu0 %v1224, 64
    %v1227 = vpop.permute.xlu0 %1226
    %v1229 = vsel %vm100, %v1227, 0
    %1231 = vmatprep.subr.bf16.mxu0 %v280
    %1232 = vmatpush1.bf16.msra.mxu0 %v279
    %1233 = vmatprep.subr.bf16.mxu0 %v282
    %1234 = vmatpush1.bf16.msra.mxu0 %v281
    %1235 = vmatprep.subr.bf16.mxu0 0
    %1236 = vmatpush1.bf16.msra.mxu0 0
    %1237 = vmatprep.subr.bf16.mxu0 0
    %1238 = vmatpush1.bf16.msra.mxu0 0
    %1239 = vmatprep.subr.bf16.mxu0 0
    %1240 = vmatpush1.bf16.msra.mxu0 0
    %1241 = vmatprep.subr.bf16.mxu0 0
    %1242 = vmatpush1.bf16.msra.mxu0 0
    %1243 = vmatprep.subr.bf16.mxu0 0
    %1244 = vmatpush1.bf16.msra.mxu0 0
    %1245 = vmatprep.subr.bf16.mxu0 0
    %1246 = vmatpush1.bf16.msra.mxu0 0
    %1247 = vmatprep.subr.bf16.mxu0 0
    %1248 = vmatpush1.bf16.msra.mxu0 0
    %1249 = vmatprep.subr.bf16.mxu0 0
    %1250 = vmatpush1.bf16.msra.mxu0 0
    %1251 = vmatprep.subr.bf16.mxu0 0
    %1252 = vmatpush1.bf16.msra.mxu0 0
    %1253 = vmatprep.subr.bf16.mxu0 0
    %1254 = vmatpush1.bf16.msra.mxu0 0
    %1255 = vmatprep.subr.bf16.mxu0 0
    %1256 = vmatpush1.bf16.msra.mxu0 0
    %1257 = vmatprep.subr.bf16.mxu0 0
    %1258 = vmatpush1.bf16.msra.mxu0 0
    %1259 = vmatprep.subr.bf16.mxu0 0
    %1260 = vmatpush1.bf16.msra.mxu0 0
    %1261 = vmatprep.subr.bf16.mxu0 0
    %1262 = vmatpush1.bf16.msra.mxu0 0
    %1263 = vmatprep.mubr.bf16.mxu0 0
    %1264 = vmatmul.mubr.bf16.gmra.mrb[0].mxu0 %v1229
    %v1265 = vpop.f32.mrb[0].mxu0
    %v1266 = vadd.f32 %v1194, %v1265
    %v1267 = vpop.f32.mrb[0].mxu0
    %v1268 = vadd.f32 %v1196, %v1267
    %v1269 = vpop.f32.mrb[0].mxu0
    %v1270 = vpop.f32.mrb[0].mxu0
    %1271 = vdwg.mxu0
    %v1272 = vxor.u32 %v1266, 2147483648
    %v1273 = vxor.u32 %v1268, 2147483648
    %v1274 = vmul.f32 %v1272, 1.442695
    %v1275 = vpow.pop %v1274
    %v1276 = vmul.f32 %v1273, 1.442695
    %v1277 = vpow.pop %v1276
    %v1278 = vadd.f32 %v1275, 1.0
    %v1279 = vadd.f32 %v1277, 1.0
    %v1280 = vrcp.pop %v1278
    %v1281 = vmul.f32 1.0, %v1280
    %v1282 = vrcp.pop %v1279
    %v1283 = vmul.f32 1.0, %v1282
    %v1284 = vtanh.pop %v1268
    %v1285 = vmul.f32 %v1281, %v1107
    %1287 = vrot.lane.b32.xlu0 %v1284, 64
    %v1288 = vpop.permute.xlu0 %1287
    %v1290 = vmul.f32 %v1281, %v1288
    %1292 = vrot.lane.b32.xlu0 %v1290, 64
    %v1293 = vpop.permute.xlu0 %1292
    %v1295 = vadd.f32 %v1285, %v1293
    %v1296 = vtanh.pop %v1295
    %1298 = vrot.lane.b32.xlu0 %v1296, 64
    %v1299 = vpop.permute.xlu0 %1298
    %v1301 = vmul.f32 %v1283, %v1299
    %1302 = vst.msk [vmem:[#allocation2 + $0x5] sm:$0x1] %vm361, %v1301
    %1303 = vmatprep.subr.bf16.mxu0 0
    %1304 = vmatpush1.bf16.msra.mxu0 %v96
    %1305 = vmatprep.subr.bf16.mxu0 0
    %1306 = vmatpush1.bf16.msra.mxu0 %v97
    %1307 = vmatprep.subr.bf16.mxu0 0
    %1308 = vmatpush1.bf16.msra.mxu0 0
    %1309 = vmatprep.subr.bf16.mxu0 0
    %1310 = vmatpush1.bf16.msra.mxu0 0
    %1311 = vmatprep.subr.bf16.mxu0 0
    %1312 = vmatpush1.bf16.msra.mxu0 0
    %1313 = vmatprep.subr.bf16.mxu0 0
    %1314 = vmatpush1.bf16.msra.mxu0 0
    %1315 = vmatprep.subr.bf16.mxu0 0
    %1316 = vmatpush1.bf16.msra.mxu0 0
    %1317 = vmatprep.subr.bf16.mxu0 0
    %1318 = vmatpush1.bf16.msra.mxu0 0
    %1319 = vmatprep.subr.bf16.mxu0 0
    %1320 = vmatpush1.bf16.msra.mxu0 0
    %1321 = vmatprep.subr.bf16.mxu0 0
    %1322 = vmatpush1.bf16.msra.mxu0 0
    %1323 = vmatprep.subr.bf16.mxu0 0
    %1324 = vmatpush1.bf16.msra.mxu0 0
    %1325 = vmatprep.subr.bf16.mxu0 0
    %1326 = vmatpush1.bf16.msra.mxu0 0
    %1327 = vmatprep.subr.bf16.mxu0 0
    %1328 = vmatpush1.bf16.msra.mxu0 0
    %1329 = vmatprep.subr.bf16.mxu0 0
    %1330 = vmatpush1.bf16.msra.mxu0 0
    %1331 = vmatprep.subr.bf16.mxu0 0
    %1332 = vmatpush1.bf16.msra.mxu0 0
    %1333 = vmatprep.subr.bf16.mxu0 0
    %1334 = vmatpush1.bf16.msra.mxu0 0
    %1335 = vmatprep.mubr.bf16.mxu0 0
    %1336 = vmatmul.mubr.bf16.gmra.mrb[0].mxu0 %v1229
    %v1337 = vpop.f32.mrb[0].mxu0
    %v1338 = vadd.f32 %v70, %v1337
    %v1339 = vpop.f32.mrb[0].mxu0
    %v1340 = vpop.f32.mrb[0].mxu0
    %v1341 = vpop.f32.mrb[0].mxu0
    %1342 = vdwg.mxu0
    %v1343 = vpack.c.bf16 %v1301, %v1301
    %v1345 = vsel %vm195, %v1343, 0
    %1347 = vmatprep.subr.bf16.mxu0 %v169
    %1348 = vmatpush1.bf16.msra.mxu0 %v168
    %1349 = vmatprep.subr.bf16.mxu0 %v171
    %1350 = vmatpush1.bf16.msra.mxu0 %v170
    %1351 = vmatprep.subr.bf16.mxu0 %v173
    %1352 = vmatpush1.bf16.msra.mxu0 %v172
    %1353 = vmatprep.subr.bf16.mxu0 %v175
    %1354 = vmatpush1.bf16.msra.mxu0 %v174
    %1355 = vmatprep.subr.bf16.mxu0 0
    %1356 = vmatpush1.bf16.msra.mxu0 0
    %1357 = vmatprep.subr.bf16.mxu0 0
    %1358 = vmatpush1.bf16.msra.mxu0 0
    %1359 = vmatprep.subr.bf16.mxu0 0
    %1360 = vmatpush1.bf16.msra.mxu0 0
    %1361 = vmatprep.subr.bf16.mxu0 0
    %1362 = vmatpush1.bf16.msra.mxu0 0
    %1363 = vmatprep.subr.bf16.mxu0 0
    %1364 = vmatpush1.bf16.msra.mxu0 0
    %1365 = vmatprep.subr.bf16.mxu0 0
    %1366 = vmatpush1.bf16.msra.mxu0 0
    %1367 = vmatprep.subr.bf16.mxu0 0
    %1368 = vmatpush1.bf16.msra.mxu0 0
    %1369 = vmatprep.subr.bf16.mxu0 0
    %1370 = vmatpush1.bf16.msra.mxu0 0
    %1371 = vmatprep.subr.bf16.mxu0 0
    %1372 = vmatpush1.bf16.msra.mxu0 0
    %1373 = vmatprep.subr.bf16.mxu0 0
    %1374 = vmatpush1.bf16.msra.mxu0 0
    %1375 = vmatprep.subr.bf16.mxu0 0
    %1376 = vmatpush1.bf16.msra.mxu0 0
    %1377 = vmatprep.subr.bf16.mxu0 0
    %1378 = vmatpush1.bf16.msra.mxu0 0
    %1379 = vmatprep.mubr.bf16.mxu0 0
    %1380 = vmatmul.mubr.bf16.gmra.mrb[0].mxu0 %v1345
    %v1381 = vpop.f32.mrb[0].mxu0
    %v1382 = vadd.f32 %v188, %v1381
    %v1383 = vpop.f32.mrb[0].mxu0
    %v1384 = vadd.f32 %v192, %v1383
    %v1385 = vpop.f32.mrb[0].mxu0
    %v1386 = vpop.f32.mrb[0].mxu0
    %1387 = vdwg.mxu0
    %v1388 = vxor.u32 %v1338, 2147483648
    %v1389 = vmul.f32 %v1388, 1.442695
    %v1390 = vpow.pop %v1389
    %v1391 = vadd.f32 %v1390, 1.0
    %v1392 = vrcp.pop %v1391
    %v1393 = vmul.f32 1.0, %v1392
    %v1394 = vtanh.pop %v1338
    %v1395 = vmul.f32 %v1393, %v1217
    %1397 = vrot.lane.b32.xlu0 %v1394, 32
    %v1398 = vpop.permute.xlu0 %1397
    %v1400 = vmul.f32 %v1393, %v1398
    %1402 = vrot.lane.b32.xlu0 %v1400, 32
    %v1403 = vpop.permute.xlu0 %1402
    %v1405 = vadd.f32 %v1395, %v1403
    %v1406 = vtanh.pop %v1405
    %1408 = vrot.lane.b32.xlu0 %v1406, 32
    %v1409 = vpop.permute.xlu0 %1408
    %v1411 = vmul.f32 %v1393, %v1409
    %v1412 = vpack.c.bf16 %v1411, %v1411
    %1414 = vrot.lane.b32.xlu0 %v1412, 64
    %v1415 = vpop.permute.xlu0 %1414
    %v1417 = vsel %vm100, %v1415, 0
    %1419 = vmatprep.subr.bf16.mxu0 %v280
    %1420 = vmatpush1.bf16.msra.mxu0 %v279
    %1421 = vmatprep.subr.bf16.mxu0 %v282
    %1422 = vmatpush1.bf16.msra.mxu0 %v281
    %1423 = vmatprep.subr.bf16.mxu0 0
    %1424 = vmatpush1.bf16.msra.mxu0 0
    %1425 = vmatprep.subr.bf16.mxu0 0
    %1426 = vmatpush1.bf16.msra.mxu0 0
    %1427 = vmatprep.subr.bf16.mxu0 0
    %1428 = vmatpush1.bf16.msra.mxu0 0
    %1429 = vmatprep.subr.bf16.mxu0 0
    %1430 = vmatpush1.bf16.msra.mxu0 0
    %1431 = vmatprep.subr.bf16.mxu0 0
    %1432 = vmatpush1.bf16.msra.mxu0 0
    %1433 = vmatprep.subr.bf16.mxu0 0
    %1434 = vmatpush1.bf16.msra.mxu0 0
    %1435 = vmatprep.subr.bf16.mxu0 0
    %1436 = vmatpush1.bf16.msra.mxu0 0
    %1437 = vmatprep.subr.bf16.mxu0 0
    %1438 = vmatpush1.bf16.msra.mxu0 0
    %1439 = vmatprep.subr.bf16.mxu0 0
    %1440 = vmatpush1.bf16.msra.mxu0 0
    %1441 = vmatprep.subr.bf16.mxu0 0
    %1442 = vmatpush1.bf16.msra.mxu0 0
    %1443 = vmatprep.subr.bf16.mxu0 0
    %1444 = vmatpush1.bf16.msra.mxu0 0
    %1445 = vmatprep.subr.bf16.mxu0 0
    %1446 = vmatpush1.bf16.msra.mxu0 0
    %1447 = vmatprep.subr.bf16.mxu0 0
    %1448 = vmatpush1.bf16.msra.mxu0 0
    %1449 = vmatprep.subr.bf16.mxu0 0
    %1450 = vmatpush1.bf16.msra.mxu0 0
    %1451 = vmatprep.mubr.bf16.mxu0 0
    %1452 = vmatmul.mubr.bf16.gmra.mrb[0].mxu0 %v1417
    %v1453 = vpop.f32.mrb[0].mxu0
    %v1454 = vadd.f32 %v1382, %v1453
    %v1455 = vpop.f32.mrb[0].mxu0
    %v1456 = vadd.f32 %v1384, %v1455
    %v1457 = vpop.f32.mrb[0].mxu0
    %v1458 = vpop.f32.mrb[0].mxu0
    %1459 = vdwg.mxu0
    %v1460 = vxor.u32 %v1454, 2147483648
    %v1461 = vxor.u32 %v1456, 2147483648
    %v1462 = vmul.f32 %v1460, 1.442695
    %v1463 = vpow.pop %v1462
    %v1464 = vmul.f32 %v1461, 1.442695
    %v1465 = vpow.pop %v1464
    %v1466 = vadd.f32 %v1463, 1.0
    %v1467 = vadd.f32 %v1465, 1.0
    %v1468 = vrcp.pop %v1466
    %v1469 = vmul.f32 1.0, %v1468
    %v1470 = vrcp.pop %v1467
    %v1471 = vmul.f32 1.0, %v1470
    %v1472 = vtanh.pop %v1456
    %v1473 = vmul.f32 %v1469, %v1295
    %1475 = vrot.lane.b32.xlu0 %v1472, 64
    %v1476 = vpop.permute.xlu0 %1475
    %v1478 = vmul.f32 %v1469, %v1476
    %1480 = vrot.lane.b32.xlu0 %v1478, 64
    %v1481 = vpop.permute.xlu0 %1480
    %v1483 = vadd.f32 %v1473, %v1481
    %v1484 = vtanh.pop %v1483
    %1486 = vrot.lane.b32.xlu0 %v1484, 64
    %v1487 = vpop.permute.xlu0 %1486
    %v1489 = vmul.f32 %v1471, %v1487
    %1490 = vst.msk [vmem:[#allocation2 + $0x6] sm:$0x1] %vm361, %v1489
    %1491 = vmatprep.subr.bf16.mxu0 0
    %1492 = vmatpush1.bf16.msra.mxu0 %v96
    %1493 = vmatprep.subr.bf16.mxu0 0
    %1494 = vmatpush1.bf16.msra.mxu0 %v97
    %1495 = vmatprep.subr.bf16.mxu0 0
    %1496 = vmatpush1.bf16.msra.mxu0 0
    %1497 = vmatprep.subr.bf16.mxu0 0
    %1498 = vmatpush1.bf16.msra.mxu0 0
    %1499 = vmatprep.subr.bf16.mxu0 0
    %1500 = vmatpush1.bf16.msra.mxu0 0
    %1501 = vmatprep.subr.bf16.mxu0 0
    %1502 = vmatpush1.bf16.msra.mxu0 0
    %1503 = vmatprep.subr.bf16.mxu0 0
    %1504 = vmatpush1.bf16.msra.mxu0 0
    %1505 = vmatprep.subr.bf16.mxu0 0
    %1506 = vmatpush1.bf16.msra.mxu0 0
    %1507 = vmatprep.subr.bf16.mxu0 0
    %1508 = vmatpush1.bf16.msra.mxu0 0
    %1509 = vmatprep.subr.bf16.mxu0 0
    %1510 = vmatpush1.bf16.msra.mxu0 0
    %1511 = vmatprep.subr.bf16.mxu0 0
    %1512 = vmatpush1.bf16.msra.mxu0 0
    %1513 = vmatprep.subr.bf16.mxu0 0
    %1514 = vmatpush1.bf16.msra.mxu0 0
    %1515 = vmatprep.subr.bf16.mxu0 0
    %1516 = vmatpush1.bf16.msra.mxu0 0
    %1517 = vmatprep.subr.bf16.mxu0 0
    %1518 = vmatpush1.bf16.msra.mxu0 0
    %1519 = vmatprep.subr.bf16.mxu0 0
    %1520 = vmatpush1.bf16.msra.mxu0 0
    %1521 = vmatprep.subr.bf16.mxu0 0
    %1522 = vmatpush1.bf16.msra.mxu0 0
    %1523 = vmatprep.mubr.bf16.mxu0 0
    %1524 = vmatmul.mubr.bf16.gmra.mrb[0].mxu0 %v1417
    %v1525 = vpop.f32.mrb[0].mxu0
    %v1526 = vadd.f32 %v70, %v1525
    %v1527 = vpop.f32.mrb[0].mxu0
    %v1528 = vpop.f32.mrb[0].mxu0
    %v1529 = vpop.f32.mrb[0].mxu0
    %1530 = vdwg.mxu0
    %v1531 = vpack.c.bf16 %v1489, %v1489
    %v1533 = vsel %vm195, %v1531, 0
    %1535 = vmatprep.subr.bf16.mxu0 %v169
    %1536 = vmatpush1.bf16.msra.mxu0 %v168
    %1537 = vmatprep.subr.bf16.mxu0 %v171
    %1538 = vmatpush1.bf16.msra.mxu0 %v170
    %1539 = vmatprep.subr.bf16.mxu0 %v173
    %1540 = vmatpush1.bf16.msra.mxu0 %v172
    %1541 = vmatprep.subr.bf16.mxu0 %v175
    %1542 = vmatpush1.bf16.msra.mxu0 %v174
    %1543 = vmatprep.subr.bf16.mxu0 0
    %1544 = vmatpush1.bf16.msra.mxu0 0
    %1545 = vmatprep.subr.bf16.mxu0 0
    %1546 = vmatpush1.bf16.msra.mxu0 0
    %1547 = vmatprep.subr.bf16.mxu0 0
    %1548 = vmatpush1.bf16.msra.mxu0 0
    %1549 = vmatprep.subr.bf16.mxu0 0
    %1550 = vmatpush1.bf16.msra.mxu0 0
    %1551 = vmatprep.subr.bf16.mxu0 0
    %1552 = vmatpush1.bf16.msra.mxu0 0
    %1553 = vmatprep.subr.bf16.mxu0 0
    %1554 = vmatpush1.bf16.msra.mxu0 0
    %1555 = vmatprep.subr.bf16.mxu0 0
    %1556 = vmatpush1.bf16.msra.mxu0 0
    %1557 = vmatprep.subr.bf16.mxu0 0
    %1558 = vmatpush1.bf16.msra.mxu0 0
    %1559 = vmatprep.subr.bf16.mxu0 0
    %1560 = vmatpush1.bf16.msra.mxu0 0
    %1561 = vmatprep.subr.bf16.mxu0 0
    %1562 = vmatpush1.bf16.msra.mxu0 0
    %1563 = vmatprep.subr.bf16.mxu0 0
    %1564 = vmatpush1.bf16.msra.mxu0 0
    %1565 = vmatprep.subr.bf16.mxu0 0
    %1566 = vmatpush1.bf16.msra.mxu0 0
    %1567 = vmatprep.mubr.bf16.mxu0 0
    %1568 = vmatmul.mubr.bf16.gmra.mrb[0].mxu0 %v1533
    %v1569 = vpop.f32.mrb[0].mxu0
    %v1570 = vadd.f32 %v188, %v1569
    %v1571 = vpop.f32.mrb[0].mxu0
    %v1572 = vadd.f32 %v192, %v1571
    %v1573 = vpop.f32.mrb[0].mxu0
    %v1574 = vpop.f32.mrb[0].mxu0
    %1575 = vdwg.mxu0
    %v1576 = vxor.u32 %v1526, 2147483648
    %v1577 = vmul.f32 %v1576, 1.442695
    %v1578 = vpow.pop %v1577
    %v1579 = vadd.f32 %v1578, 1.0
    %v1580 = vrcp.pop %v1579
    %v1581 = vmul.f32 1.0, %v1580
    %v1582 = vtanh.pop %v1526
    %v1583 = vmul.f32 %v1581, %v1405
    %1585 = vrot.lane.b32.xlu0 %v1582, 32
    %v1586 = vpop.permute.xlu0 %1585
    %v1588 = vmul.f32 %v1581, %v1586
    %1590 = vrot.lane.b32.xlu0 %v1588, 32
    %v1591 = vpop.permute.xlu0 %1590
    %v1593 = vadd.f32 %v1583, %v1591
    %v1594 = vtanh.pop %v1593
    %1596 = vrot.lane.b32.xlu0 %v1594, 32
    %v1597 = vpop.permute.xlu0 %1596
    %v1599 = vmul.f32 %v1581, %v1597
    %v1600 = vpack.c.bf16 %v1599, %v1599
    %1602 = vrot.lane.b32.xlu0 %v1600, 64
    %v1603 = vpop.permute.xlu0 %1602
    %v1605 = vsel %vm100, %v1603, 0
    %1607 = vmatprep.subr.bf16.mxu0 %v280
    %1608 = vmatpush1.bf16.msra.mxu0 %v279
    %1609 = vmatprep.subr.bf16.mxu0 %v282
    %1610 = vmatpush1.bf16.msra.mxu0 %v281
    %1611 = vmatprep.subr.bf16.mxu0 0
    %1612 = vmatpush1.bf16.msra.mxu0 0
    %1613 = vmatprep.subr.bf16.mxu0 0
    %1614 = vmatpush1.bf16.msra.mxu0 0
    %1615 = vmatprep.subr.bf16.mxu0 0
    %1616 = vmatpush1.bf16.msra.mxu0 0
    %1617 = vmatprep.subr.bf16.mxu0 0
    %1618 = vmatpush1.bf16.msra.mxu0 0
    %1619 = vmatprep.subr.bf16.mxu0 0
    %1620 = vmatpush1.bf16.msra.mxu0 0
    %1621 = vmatprep.subr.bf16.mxu0 0
    %1622 = vmatpush1.bf16.msra.mxu0 0
    %1623 = vmatprep.subr.bf16.mxu0 0
    %1624 = vmatpush1.bf16.msra.mxu0 0
    %1625 = vmatprep.subr.bf16.mxu0 0
    %1626 = vmatpush1.bf16.msra.mxu0 0
    %1627 = vmatprep.subr.bf16.mxu0 0
    %1628 = vmatpush1.bf16.msra.mxu0 0
    %1629 = vmatprep.subr.bf16.mxu0 0
    %1630 = vmatpush1.bf16.msra.mxu0 0
    %1631 = vmatprep.subr.bf16.mxu0 0
    %1632 = vmatpush1.bf16.msra.mxu0 0
    %1633 = vmatprep.subr.bf16.mxu0 0
    %1634 = vmatpush1.bf16.msra.mxu0 0
    %1635 = vmatprep.subr.bf16.mxu0 0
    %1636 = vmatpush1.bf16.msra.mxu0 0
    %1637 = vmatprep.subr.bf16.mxu0 0
    %1638 = vmatpush1.bf16.msra.mxu0 0
    %1639 = vmatprep.mubr.bf16.mxu0 0
    %1640 = vmatmul.mubr.bf16.gmra.mrb[0].mxu0 %v1605
    %v1641 = vpop.f32.mrb[0].mxu0
    %v1642 = vadd.f32 %v1570, %v1641
    %v1643 = vpop.f32.mrb[0].mxu0
    %v1644 = vadd.f32 %v1572, %v1643
    %v1645 = vpop.f32.mrb[0].mxu0
    %v1646 = vpop.f32.mrb[0].mxu0
    %1647 = vdwg.mxu0
    %v1648 = vxor.u32 %v1642, 2147483648
    %v1649 = vxor.u32 %v1644, 2147483648
    %v1650 = vmul.f32 %v1648, 1.442695
    %v1651 = vpow.pop %v1650
    %v1652 = vmul.f32 %v1649, 1.442695
    %v1653 = vpow.pop %v1652
    %v1654 = vadd.f32 %v1651, 1.0
    %v1655 = vadd.f32 %v1653, 1.0
    %v1656 = vrcp.pop %v1654
    %v1657 = vmul.f32 1.0, %v1656
    %v1658 = vrcp.pop %v1655
    %v1659 = vmul.f32 1.0, %v1658
    %v1660 = vtanh.pop %v1644
    %v1661 = vmul.f32 %v1657, %v1483
    %1663 = vrot.lane.b32.xlu0 %v1660, 64
    %v1664 = vpop.permute.xlu0 %1663
    %v1666 = vmul.f32 %v1657, %v1664
    %1668 = vrot.lane.b32.xlu0 %v1666, 64
    %v1669 = vpop.permute.xlu0 %1668
    %v1671 = vadd.f32 %v1661, %v1669
    %v1672 = vtanh.pop %v1671
    %1674 = vrot.lane.b32.xlu0 %v1672, 64
    %v1675 = vpop.permute.xlu0 %1674
    %v1677 = vmul.f32 %v1659, %v1675
    %1678 = vst.msk [vmem:[#allocation2 + $0x7] sm:$0x1] %vm361, %v1677
    %v1679 = vld [vmem:[#allocation2] sm:$0xff]
    %v1680 = vld [vmem:[%s5] sm:$0x1]
    %v1682 = vlaneseq
    %v1683 = vshrl.u32 %v1682, 7
    %v1684 = vsub.s32 0, %v1683
    %v1685 = vrot.slane %v1680, %v1684
    %v1687 = vmul.f32 %v1679, %v1685
    %v1688 = vsel %vm195, %v1687, 0.0
    %1689 = vadd.xlane.f32.xlu0 %v1688
    %v1690 = vpop.xlane.xlu0 %1689
    %v1691 = vld [vmem:[#allocation3] sm:$0x1]
    %v1693 = vlaneseq
    %v1694 = vshrl.u32 %v1693, 7
    %v1695 = vsub.s32 0, %v1694
    %v1696 = vrot.slane %v1691, %v1695
    %v1698 = vadd.f32 %v1690, %v1696
    %vm1699 = vcmask 7168
    %1700 = vst.msk [vmem:[%s7] sm:$0xff] %vm1699, %v1698
    // Predicated region
    $region42: #{tpu_custom_call.1} parent=1 // pred_check
      _
    $region43: #{tpu_custom_call.1} parent=1 // pred_check_branch
      %1702 = sbr.rel (0) target = $region45
    $region44: #{tpu_custom_call.1} parent=1 // pred_region
      _
    $region45: #{tpu_custom_call.1} parent=1 // pred_fallthru
      _
    // Predicated region
    $region46: #{tpu_custom_call.1} parent=1 // pred_check
      _
    $region47: #{tpu_custom_call.1} parent=1 // pred_check_branch
      %1704 = sbr.rel (0) target = $region49
    $region48: #{tpu_custom_call.1} parent=1 // pred_region
      _
    $region49: #{tpu_custom_call.1} parent=1 // pred_fallthru
      _
    %1705 = vsyncpa [#allocation5], 1
    %1706 = vsyncpa [#allocation7], 1

</llo_original>
